<compile_context>
chip_gen: v5e
topology: v5e:2x2
jax: 0.10.0
libtpu: 0.0.40
codegen_flags: <defaults>
</compile_context>

<pallas_src>
import functools

import jax
import jax.numpy as jnp
import numpy as np
from jax import lax
from jax.experimental import pallas as pl
from jax.experimental.pallas import tpu as pltpu


_GELU_C = 0.7978845608028654  # sqrt(2 / pi)


def _gelu_tanh(v):
    return 0.5 * v * (1.0 + jnp.tanh(_GELU_C * (v + 0.044715 * v * v * v)))


def _round_up(v, m):
    return (v + m - 1) // m * m


def _vmem_limit_bytes():
    """Generation-aware scoped-VMEM request (v5e/v6e: 128 MiB physical, v7x: 64)."""
    cap = 128 << 20
    try:
        cap = int(getattr(pltpu.get_tpu_info(), "vmem_capacity_bytes", cap))
    except Exception:
        pass
    return int(min(cap * 3 // 4, 96 << 20))


def _pick_row_tile(N, H, W, chp, cop, vmem_limit):
    """Largest divisor of H whose per-tile live data fits the VMEM budget, keeping
    at least 2 grid steps when possible (so both v7x TensorCores get work)."""
    lane = 128
    # fixed consumers: lane-padded, double-buffered input slab + weights + bn
    fixed = ((H + 2) * W * lane * 2 * 2
             + 2 * (3 * 3 * chp * cop * 2 + 32 * chp * 2 + 8 * lane * 4))
    budget = max(vmem_limit - fixed - (4 << 20), 1 << 20)

    def tile_bytes(th):
        l1, lo = (th + 2) * W, th * W
        # f32 conv1 acc + masked h + ~4 bf16 tap/concat copies on (l1, chp);
        # f32 conv2 acc + double-buffered bf16 output block on (lo, cop)
        return l1 * chp * (4 + 4 + 4 * 2) + lo * cop * (4 + 2 * 2 * 2)

    cands = [d for d in range(1, H + 1)
             if H % d == 0 and ((d * W) % 8 == 0 or d == H)]
    fit = [d for d in cands if tile_bytes(d) <= budget] or [min(cands)]
    th = max(fit)
    if N * (H // th) < 2:                       # megacore: keep both TCs busy
        smaller = [d for d in fit if N * (H // d) >= 2]
        if smaller:
            th = max(smaller)
    return th


def _stem_kernel(TH, W, H, trigger, x_ref, w1_ref, w2_ref, bn_ref, out_ref):
    """One (batch, row-tile) step.

    x_ref  : (1, (H+2)*W, 9*Cin) bf16  conv1 im2col (all 9 taps folded into channels),
                                       rows indexed by conv1-output row -1 .. H
    w1_ref : (9*Cin, CHp)        bf16
    w2_ref : (3, 3*CHp, COp)     bf16  conv2 weights, dx taps folded into K per dy
    bn_ref : (2, CHp)            f32   folded BN scale / bias (identity if !trigger)
    out_ref: (1, TH*W, COp)      bf16
    """
    L1 = (TH + 2) * W        # conv1-output rows*W this tile needs (+-1 row halo)
    LO = TH * W              # output rows*W

    t = pl.program_id(1)
    r0 = t * TH                                   # first output row (global)
    src0 = pl.multiple_of(t * LO, 8)              # slab start (flattened, aligned)

    # ---------------- conv1: one matmul, K = 9*Cin ----------------------------
    xs = x_ref[0, pl.ds(src0, L1), :]             # (L1, 9*Cin) bf16
    acc1 = jnp.dot(xs, w1_ref[...], preferred_element_type=jnp.float32)

    # ---------------- optional BatchNorm (inference) + GELU -------------------
    if trigger:
        h = acc1 * bn_ref[0:1, :] + bn_ref[1:2, :]
        h = _gelu_tanh(h)
    else:
        h = acc1

    # conv2's padding=1 sees zeros above row 0 / below row H-1, so halo rows of h
    # outside the image must be exactly zero (only first / last tile).
    ridx = lax.broadcasted_iota(jnp.int32, (L1, 1), 0)
    pad_top = jnp.logical_and(r0 == 0, ridx < W)
    pad_bot = jnp.logical_and(r0 + TH == H, ridx >= L1 - W)
    h = jnp.where(jnp.logical_or(pad_top, pad_bot), 0.0, h)

    # ---------------- conv2: dx taps folded into K -> 3 matmuls of K=3*CHp ----
    col = ridx % W
    h_c = h.astype(jnp.bfloat16)
    h_l = jnp.where(col > 0,
                    pltpu.roll(h, shift=1, axis=0), 0.0).astype(jnp.bfloat16)
    h_r = jnp.where(col < W - 1,
                    pltpu.roll(h, shift=L1 - 1, axis=0), 0.0).astype(jnp.bfloat16)
    h_cat = jnp.concatenate([h_l, h_c, h_r], axis=-1)       # (L1, 3*CHp) bf16

    c_out = w2_ref.shape[-1]
    acc2 = jnp.zeros((LO, c_out), jnp.float32)
    for dy in range(3):
        acc2 = acc2 + jnp.dot(h_cat[dy * W:dy * W + LO, :], w2_ref[dy],
                              preferred_element_type=jnp.float32)

    out_ref[0] = acc2.astype(out_ref.dtype)


def _stem_fallback_nhwc(x, params, *, norm_trigger, stride, bn_eps):
    """Plain-JAX path (used only for downsample=True, which is not fused)."""
    dn = ("NHWC", "HWIO", "NHWC")
    w1 = jnp.transpose(params["w1"], (2, 3, 1, 0))
    w2 = jnp.transpose(params["w2"], (2, 3, 1, 0))
    h = lax.conv_general_dilated(x, w1, (stride, stride), ((1, 1), (1, 1)),
                                 dimension_numbers=dn,
                                 preferred_element_type=jnp.float32)
    if norm_trigger:
        scale = params["bn_gamma"] / jnp.sqrt(params["bn_var"] + bn_eps)
        bias = params["bn_beta"] - params["bn_mean"] * scale
        h = _gelu_tanh(h * scale + bias)
    return lax.conv_general_dilated(h, w2, (1, 1), ((1, 1), (1, 1)),
                                    dimension_numbers=dn,
                                    preferred_element_type=jnp.float32)


def stemblock_forward_nhwc(x, params, *, norm_trigger=False, downsample=False,
                           row_tile=None, bn_eps=1e-5, keep_padded_channels=False,
                           out_dtype=jnp.bfloat16):
    """Fused StemBlock forward on an NHWC activation; returns NHWC (channels last).
    With keep_padded_channels=True the 128-lane-padded output is returned as-is
    (extra lanes are exact zeros) so no standalone channel-slice pass is emitted."""
    N, H, W, cin = x.shape
    c_hid = params["w1"].shape[0]
    c_out = params["w2"].shape[0]
    assert params["w1"].shape == (c_hid, cin, 3, 3)
    assert params["w2"].shape == (c_out, c_hid, 3, 3)

    if downsample:
        # TODO(synk): stride-2 block1 is not fused; plain-JAX fallback.
        out = _stem_fallback_nhwc(x, params, norm_trigger=norm_trigger,
                                  stride=2, bn_eps=bn_eps)
        return out.astype(out_dtype)

    chp = _round_up(c_hid, 128)   # lane-dense hidden channels
    cop = _round_up(c_out, 128)   # lane-dense output channels (unmasked stores)

    # ---- weights: torch (O, I, kh, kw) -> K-folded matmul layouts, bf16 -------
    w1 = jnp.transpose(params["w1"], (2, 3, 1, 0)).reshape(9 * cin, c_hid)
    w1 = jnp.pad(w1, ((0, 0), (0, chp - c_hid))).astype(jnp.bfloat16)
    w2 = jnp.transpose(params["w2"], (2, 3, 1, 0))                 # (3,3,I,O)
    w2 = jnp.pad(w2, ((0, 0), (0, 0), (0, chp - c_hid), (0, cop - c_out)))
    w2 = w2.reshape(3, 3 * chp, cop).astype(jnp.bfloat16)

    # ---- BatchNorm2d folded to per-channel scale / bias (inference mode) ------
    if norm_trigger:
        scale = params["bn_gamma"] / jnp.sqrt(params["bn_var"] + bn_eps)
        bias = params["bn_beta"] - params["bn_mean"] * scale
    else:
        scale = jnp.ones((c_hid,), jnp.float32)
        bias = jnp.zeros((c_hid,), jnp.float32)
    bn = jnp.stack([jnp.pad(scale, (0, chp - c_hid), constant_values=1.0),
                    jnp.pad(bias, (0, chp - c_hid))], axis=0).astype(jnp.float32)

    # ---- input: conv1 im2col with ALL 9 taps folded into channels, indexed by
    #      conv1-output row, plus a 1-row zero halo top/bottom for conv2 (those
    #      virtual rows are masked to zero in-kernel anyway). -------------------
    xpad = jnp.pad(x, ((0, 0), (1, 1), (1, 1), (0, 0)))
    x9 = jnp.concatenate(
        [xpad[:, dy:dy + H, dx:dx + W, :] for dy in range(3) for dx in range(3)],
        axis=-1)                                               # (N, H, W, 9*cin)
    x9 = jnp.pad(x9, ((0, 0), (1, 1), (0, 0), (0, 0)))         # conv2 row halo
    hp = H + 2
    x9 = x9.reshape(N, hp * W, 9 * cin).astype(jnp.bfloat16)

    vmem_limit = _vmem_limit_bytes()
    th = row_tile if row_tile is not None else _pick_row_tile(N, H, W, chp, cop,
                                                              vmem_limit)
    assert H % th == 0, f"row_tile={th} must divide H={H}"
    assert (th * W) % 8 == 0 or th == H, "output tile rows*W must be 8-aligned"

    kernel = functools.partial(_stem_kernel, th, W, H, bool(norm_trigger))
    out = pl.pallas_call(
        kernel,
        out_shape=jax.ShapeDtypeStruct((N, H * W, cop), out_dtype),
        grid=(N, H // th),
        in_specs=[
            # whole (9*cin-narrow) padded im2col slab per batch element; fetched
            # once per n since its block index does not depend on t.
            pl.BlockSpec((1, hp * W, 9 * cin), lambda n, t: (n, 0, 0)),
            pl.BlockSpec((9 * cin, chp), lambda n, t: (0, 0)),
            pl.BlockSpec((3, 3 * chp, cop), lambda n, t: (0, 0, 0)),
            pl.BlockSpec((2, chp), lambda n, t: (0, 0)),
        ],
        out_specs=pl.BlockSpec((1, th * W, cop), lambda n, t: (n, t, 0)),
        compiler_params=pltpu.CompilerParams(
            # no cross-tile reduction in a stem block -> both axes parallel
            dimension_semantics=("parallel", "parallel"),
            vmem_limit_bytes=vmem_limit,
        ),
    )(x9, w1, w2, bn)

    out = out.reshape(N, H, W, cop)
    if keep_padded_channels:
        return out
    return out[..., :c_out]


def stemblock_forward(x_nchw, params, **kwargs):
    """NCHW (PyTorch-convention) wrapper.  In a full network keep activations NHWC
    between blocks and call stemblock_forward_nhwc(..., keep_padded_channels=True)
    so layout transposes / channel slices happen once at model entry/exit."""
    x = jnp.transpose(x_nchw, (0, 2, 3, 1))
    out = stemblock_forward_nhwc(x, params, **kwargs)
    return jnp.transpose(out, (0, 3, 1, 2))


def stemblock_reference(x_nchw, params, *, norm_trigger=False, downsample=False,
                        bn_eps=1e-5, match_kernel_precision=False):
    """Plain-JAX reference.  With match_kernel_precision=True it casts operands to
    bf16 at the same points as the kernel (f32 accumulation)."""
    s = 2 if downsample else 1
    x = jnp.transpose(x_nchw, (0, 2, 3, 1))                    # NHWC
    w1 = jnp.transpose(params["w1"], (2, 3, 1, 0))             # HWIO
    w2 = jnp.transpose(params["w2"], (2, 3, 1, 0))
    if match_kernel_precision:
        x = x.astype(jnp.bfloat16)
        w1 = w1.astype(jnp.bfloat16)
        w2 = w2.astype(jnp.bfloat16)
    dn = ("NHWC", "HWIO", "NHWC")
    h = lax.conv_general_dilated(x, w1, (s, s), ((1, 1), (1, 1)),
                                 dimension_numbers=dn,
                                 preferred_element_type=jnp.float32)
    if norm_trigger:
        scale = params["bn_gamma"] / jnp.sqrt(params["bn_var"] + bn_eps)
        bias = params["bn_beta"] - params["bn_mean"] * scale
        h = h * scale + bias
        h = _gelu_tanh(h)
    if match_kernel_precision:
        h = h.astype(jnp.bfloat16)
    out = lax.conv_general_dilated(h, w2, (1, 1), ((1, 1), (1, 1)),
                                   dimension_numbers=dn,
                                   preferred_element_type=jnp.float32)
    return jnp.transpose(out, (0, 3, 1, 2))                    # back to NCHW


def init_params(key, cin=3, hidden=64, cout=64):
    """Deterministic synthetic parameters in PyTorch layouts (O, I, kH, kW)."""
    ks = jax.random.split(key, 6)
    w1_std = 1.0 / np.sqrt(9 * cin)
    w2_std = 1.0 / np.sqrt(9 * hidden)
    return {
        "w1": w1_std * jax.random.normal(ks[0], (hidden, cin, 3, 3), jnp.float32),
        "w2": w2_std * jax.random.normal(ks[1], (cout, hidden, 3, 3), jnp.float32),
        "bn_gamma": 1.0 + 0.1 * jax.random.normal(ks[2], (hidden,), jnp.float32),
        "bn_beta": 0.1 * jax.random.normal(ks[3], (hidden,), jnp.float32),
        "bn_mean": 0.1 * jax.random.normal(ks[4], (hidden,), jnp.float32),
        "bn_var": jax.random.uniform(ks[5], (hidden,), jnp.float32,
                                     minval=0.5, maxval=1.5),
    }


if __name__ == "__main__":
    key = jax.random.PRNGKey(0)
    kx, kp = jax.random.split(key)

    # Module defaults: in_channels=3, hidden_channels=0 -> hidden = out_channels = 64.
    N, Cin, H, W = 2, 3, 16, 16
    hidden = out_ch = 64

    x = jax.random.normal(kx, (N, Cin, H, W), jnp.float32)
    params = init_params(kp, Cin, hidden, out_ch)

    def check(out, trig):
        out = np.asarray(out).astype(np.float32)
        ref_m = np.asarray(stemblock_reference(x, params, norm_trigger=trig,
                                               match_kernel_precision=True))
        ref_f = np.asarray(stemblock_reference(x, params, norm_trigger=trig,
                                               match_kernel_precision=False))
        # element-wise check against a precision-matched (bf16 operand, f32
        # accumulation) reference; kernel output itself is bf16-rounded.
        np.testing.assert_allclose(out, ref_m, rtol=2e-2, atol=2e-2)
        # global sanity check against the pure-f32 reference
        rel = np.linalg.norm(out - ref_f) / np.linalg.norm(ref_f)
        assert rel < 2e-2, f"relative L2 error vs f32 reference too large: {rel}"

    # config 1: norm_trigger=True (BN + GELU between convs), explicit 8-row tiles
    # (2 spatial tiles per image -> exercises the halo / boundary-mask logic).
    out1 = jax.block_until_ready(
        stemblock_forward(x, params, norm_trigger=True, row_tile=8))
    check(out1, True)

    # config 2: norm_trigger=False (module default), auto row tile (single tile).
    out2 = jax.block_until_ready(
        stemblock_forward(x, params, norm_trigger=False))
    check(out2, False)

    print("KERNEL_OK")
</pallas_src>

<mosaic_0001>
module attributes {stable_mosaic.version = 11 : i64} {
  func.func @_stem_kernel(%arg0: i32, %arg1: i32, %arg2: memref<1x288x27xbf16, #tpu.memory_space<vmem>>, %arg3: memref<27x128xbf16, #tpu.memory_space<vmem>>, %arg4: memref<3x384x128xbf16, #tpu.memory_space<vmem>>, %arg5: memref<2x128xf32, #tpu.memory_space<vmem>>, %arg6: memref<1x128x128xbf16, #tpu.memory_space<vmem>>) attributes {dimension_semantics = [#tpu.dimension_semantics<parallel>, #tpu.dimension_semantics<parallel>], iteration_bounds = array<i64: 2, 2>, scalar_prefetch = 0 : i64, scratch_operands = 0 : i64, tpu.core_type = #tpu.core_type<tc>, window_params = [{transform_indices = @transform_0, window_bounds = array<i64: 1, 288, 27>}, {pipeline_mode = #tpu.pipeline_mode<synchronous>, transform_indices = @transform_1, window_bounds = array<i64: 27, 128>}, {pipeline_mode = #tpu.pipeline_mode<synchronous>, transform_indices = @transform_2, window_bounds = array<i64: 3, 384, 128>}, {pipeline_mode = #tpu.pipeline_mode<synchronous>, transform_indices = @transform_3, window_bounds = array<i64: 2, 128>}, {transform_indices = @transform_4, window_bounds = array<i64: 1, 128, 128>}]} {
    %c8_i32 = arith.constant 8 : i32
    %0 = arith.muli %arg1, %c8_i32 : i32
    %c128_i32 = arith.constant 128 : i32
    %1 = arith.muli %arg1, %c128_i32 : i32
    %2 = tpu.assume_multiple %1, 8 : i32
    %c0 = arith.constant 0 : index
    %3 = arith.index_cast %2 : i32 to index
    %c0_0 = arith.constant 0 : index
    %4 = vector.load %arg2[%c0, %3, %c0_0] : memref<1x288x27xbf16, #tpu.memory_space<vmem>>, vector<1x160x27xbf16>
    %5 = vector.shape_cast %4 : vector<1x160x27xbf16> to vector<160x27xbf16>
    %c0_1 = arith.constant 0 : index
    %c0_2 = arith.constant 0 : index
    %6 = vector.load %arg3[%c0_1, %c0_2] : memref<27x128xbf16, #tpu.memory_space<vmem>>, vector<27x128xbf16>
    %cst = arith.constant dense<0.000000e+00> : vector<160x128xf32>
    %7 = tpu.matmul %5, %6, %cst {dimension_numbers = #tpu.dot_dimension_numbers<[1], [0], [0], [1], [0, 0, 1, 1], [], []>} : vector<160x27xbf16>, vector<27x128xbf16>, vector<160x128xf32> -> vector<160x128xf32>
    %c0_3 = arith.constant 0 : index
    %c0_4 = arith.constant 0 : index
    %8 = vector.load %arg5[%c0_3, %c0_4] : memref<2x128xf32, #tpu.memory_space<vmem>>, vector<1x128xf32>
    %9 = vector.broadcast %8 : vector<1x128xf32> to vector<160x128xf32>
    %10 = arith.mulf %7, %9 : vector<160x128xf32>
    %c1 = arith.constant 1 : index
    %c0_5 = arith.constant 0 : index
    %11 = vector.load %arg5[%c1, %c0_5] : memref<2x128xf32, #tpu.memory_space<vmem>>, vector<1x128xf32>
    %12 = vector.broadcast %11 : vector<1x128xf32> to vector<160x128xf32>
    %13 = arith.addf %10, %12 : vector<160x128xf32>
    %cst_6 = arith.constant 5.000000e-01 : f32
    %14 = vector.broadcast %cst_6 : f32 to vector<160x128xf32>
    %15 = arith.mulf %14, %13 : vector<160x128xf32>
    %cst_7 = arith.constant 4.471500e-02 : f32
    %16 = vector.broadcast %cst_7 : f32 to vector<160x128xf32>
    %17 = arith.mulf %16, %13 : vector<160x128xf32>
    %18 = arith.mulf %17, %13 : vector<160x128xf32>
    %19 = arith.mulf %18, %13 : vector<160x128xf32>
    %20 = arith.addf %13, %19 : vector<160x128xf32>
    %cst_8 = arith.constant 0.797884583 : f32
    %21 = vector.broadcast %cst_8 : f32 to vector<160x128xf32>
    %22 = arith.mulf %21, %20 : vector<160x128xf32>
    %23 = math.tanh %22 : vector<160x128xf32>
    %cst_9 = arith.constant 1.000000e+00 : f32
    %24 = vector.broadcast %cst_9 : f32 to vector<160x128xf32>
    %25 = arith.addf %24, %23 : vector<160x128xf32>
    %26 = arith.mulf %15, %25 : vector<160x128xf32>
    %27 = tpu.iota {dimensions = array<i32: 0>} : vector<160x1xi32>
    %c0_i32 = arith.constant 0 : i32
    %28 = arith.cmpi eq, %0, %c0_i32 : i32
    %c16_i32 = arith.constant 16 : i32
    %29 = vector.broadcast %c16_i32 : i32 to vector<160x1xi32>
    %30 = arith.cmpi slt, %27, %29 : vector<160x1xi32>
    %31 = vector.broadcast %28 : i1 to vector<160x1xi1>
    %32 = arith.andi %31, %30 : vector<160x1xi1>
    %c8_i32_10 = arith.constant 8 : i32
    %33 = arith.addi %0, %c8_i32_10 : i32
    %c16_i32_11 = arith.constant 16 : i32
    %34 = arith.cmpi eq, %33, %c16_i32_11 : i32
    %c144_i32 = arith.constant 144 : i32
    %35 = vector.broadcast %c144_i32 : i32 to vector<160x1xi32>
    %36 = arith.cmpi sge, %27, %35 : vector<160x1xi32>
    %37 = vector.broadcast %34 : i1 to vector<160x1xi1>
    %38 = arith.andi %37, %36 : vector<160x1xi1>
    %39 = arith.ori %32, %38 : vector<160x1xi1>
    %cst_12 = arith.constant 0.000000e+00 : f32
    %40 = vector.shape_cast %39 : vector<160x1xi1> to vector<160x1xi1>
    %41 = vector.broadcast %40 : vector<160x1xi1> to vector<160x128xi1>
    %42 = vector.broadcast %cst_12 : f32 to vector<160x128xf32>
    %43 = arith.select %41, %42, %26 : vector<160x128xi1>, vector<160x128xf32>
    %c16_i32_13 = arith.constant 16 : i32
    %c0_i32_14 = arith.constant 0 : i32
    %44 = arith.cmpi eq, %c16_i32_13, %c0_i32_14 : i32
    %c1_i32 = arith.constant 1 : i32
    %45 = arith.select %44, %c1_i32, %c16_i32_13 : i32
    %46 = vector.broadcast %45 : i32 to vector<160x1xi32>
    %47 = arith.remsi %27, %46 : vector<160x1xi32>
    %c0_i32_15 = arith.constant 0 : i32
    %48 = vector.broadcast %c0_i32_15 : i32 to vector<160x1xi32>
    %49 = arith.cmpi ne, %47, %48 : vector<160x1xi32>
    %c0_i32_16 = arith.constant 0 : i32
    %50 = vector.broadcast %c0_i32_16 : i32 to vector<160x1xi32>
    %51 = arith.cmpi slt, %47, %50 : vector<160x1xi32>
    %c0_i32_17 = arith.constant 0 : i32
    %52 = arith.cmpi slt, %45, %c0_i32_17 : i32
    %53 = vector.broadcast %52 : i1 to vector<160x1xi1>
    %54 = vector.broadcast %53 : vector<160x1xi1> to vector<160x1xi1>
    %55 = arith.xori %51, %54 : vector<160x1xi1>
    %56 = arith.andi %55, %49 : vector<160x1xi1>
    %57 = vector.broadcast %45 : i32 to vector<160x1xi32>
    %58 = arith.addi %47, %57 : vector<160x1xi32>
    %59 = arith.select %56, %58, %47 : vector<160x1xi1>, vector<160x1xi32>
    %60 = arith.truncf %43 : vector<160x128xf32> to vector<160x128xbf16>
    %c0_i32_18 = arith.constant 0 : i32
    %61 = vector.broadcast %c0_i32_18 : i32 to vector<160x1xi32>
    %62 = arith.cmpi sgt, %59, %61 : vector<160x1xi32>
    %c1_i32_19 = arith.constant 1 : i32
    %63 = tpu.dynamic_rotate %43 by %c1_i32_19 dim 0 : vector<160x128xf32>, i32 -> vector<160x128xf32>
    %cst_20 = arith.constant 0.000000e+00 : f32
    %64 = vector.shape_cast %62 : vector<160x1xi1> to vector<160x1xi1>
    %65 = vector.broadcast %64 : vector<160x1xi1> to vector<160x128xi1>
    %66 = vector.broadcast %cst_20 : f32 to vector<160x128xf32>
    %67 = arith.select %65, %63, %66 : vector<160x128xi1>, vector<160x128xf32>
    %68 = arith.truncf %67 : vector<160x128xf32> to vector<160x128xbf16>
    %c15_i32 = arith.constant 15 : i32
    %69 = vector.broadcast %c15_i32 : i32 to vector<160x1xi32>
    %70 = arith.cmpi slt, %59, %69 : vector<160x1xi32>
    %c159_i32 = arith.constant 159 : i32
    %71 = tpu.dynamic_rotate %43 by %c159_i32 dim 0 : vector<160x128xf32>, i32 -> vector<160x128xf32>
    %cst_21 = arith.constant 0.000000e+00 : f32
    %72 = vector.shape_cast %70 : vector<160x1xi1> to vector<160x1xi1>
    %73 = vector.broadcast %72 : vector<160x1xi1> to vector<160x128xi1>
    %74 = vector.broadcast %cst_21 : f32 to vector<160x128xf32>
    %75 = arith.select %73, %71, %74 : vector<160x128xi1>, vector<160x128xf32>
    %76 = arith.truncf %75 : vector<160x128xf32> to vector<160x128xbf16>
    %77 = tpu.concatenate %68, %60, %76 in 1 : vector<160x128xbf16>, vector<160x128xbf16>, vector<160x128xbf16> -> vector<160x384xbf16>
    %cst_22 = arith.constant 0.000000e+00 : f32
    %78 = vector.broadcast %cst_22 : f32 to vector<128x128xf32>
    %79 = vector.extract_strided_slice %77 {offsets = [0, 0], sizes = [128, 384], strides = [1, 1]} : vector<160x384xbf16> to vector<128x384xbf16>
    %c0_23 = arith.constant 0 : index
    %c0_24 = arith.constant 0 : index
    %c0_25 = arith.constant 0 : index
    %80 = vector.load %arg4[%c0_23, %c0_24, %c0_25] : memref<3x384x128xbf16, #tpu.memory_space<vmem>>, vector<1x384x128xbf16>
    %81 = vector.shape_cast %80 : vector<1x384x128xbf16> to vector<384x128xbf16>
    %cst_26 = arith.constant dense<0.000000e+00> : vector<128x128xf32>
    %82 = tpu.matmul %79, %81, %cst_26 {dimension_numbers = #tpu.dot_dimension_numbers<[1], [0], [0], [1], [0, 0, 1, 1], [], []>} : vector<128x384xbf16>, vector<384x128xbf16>, vector<128x128xf32> -> vector<128x128xf32>
    %83 = arith.addf %78, %82 : vector<128x128xf32>
    %84 = vector.extract_strided_slice %77 {offsets = [16, 0], sizes = [128, 384], strides = [1, 1]} : vector<160x384xbf16> to vector<128x384xbf16>
    %c1_27 = arith.constant 1 : index
    %c0_28 = arith.constant 0 : index
    %c0_29 = arith.constant 0 : index
    %85 = vector.load %arg4[%c1_27, %c0_28, %c0_29] : memref<3x384x128xbf16, #tpu.memory_space<vmem>>, vector<1x384x128xbf16>
    %86 = vector.shape_cast %85 : vector<1x384x128xbf16> to vector<384x128xbf16>
    %cst_30 = arith.constant dense<0.000000e+00> : vector<128x128xf32>
    %87 = tpu.matmul %84, %86, %cst_30 {dimension_numbers = #tpu.dot_dimension_numbers<[1], [0], [0], [1], [0, 0, 1, 1], [], []>} : vector<128x384xbf16>, vector<384x128xbf16>, vector<128x128xf32> -> vector<128x128xf32>
    %88 = arith.addf %83, %87 : vector<128x128xf32>
    %89 = vector.extract_strided_slice %77 {offsets = [32, 0], sizes = [128, 384], strides = [1, 1]} : vector<160x384xbf16> to vector<128x384xbf16>
    %c2 = arith.constant 2 : index
    %c0_31 = arith.constant 0 : index
    %c0_32 = arith.constant 0 : index
    %90 = vector.load %arg4[%c2, %c0_31, %c0_32] : memref<3x384x128xbf16, #tpu.memory_space<vmem>>, vector<1x384x128xbf16>
    %91 = vector.shape_cast %90 : vector<1x384x128xbf16> to vector<384x128xbf16>
    %cst_33 = arith.constant dense<0.000000e+00> : vector<128x128xf32>
    %92 = tpu.matmul %89, %91, %cst_33 {dimension_numbers = #tpu.dot_dimension_numbers<[1], [0], [0], [1], [0, 0, 1, 1], [], []>} : vector<128x384xbf16>, vector<384x128xbf16>, vector<128x128xf32> -> vector<128x128xf32>
    %93 = arith.addf %88, %92 : vector<128x128xf32>
    %94 = arith.truncf %93 : vector<128x128xf32> to vector<128x128xbf16>
    %c0_34 = arith.constant 0 : index
    %c0_35 = arith.constant 0 : index
    %c0_36 = arith.constant 0 : index
    %95 = vector.load %arg6[%c0_34, %c0_35, %c0_36] : memref<1x128x128xbf16, #tpu.memory_space<vmem>>, vector<1x128x128xbf16>
    %96 = vector.shape_cast %95 : vector<1x128x128xbf16> to vector<128x128xbf16>
    %97 = vector.shape_cast %94 : vector<128x128xbf16> to vector<1x128x128xbf16>
    tpu.vector_store %arg6[%c0_34, %c0_35, %c0_36], %97 {strides = array<i32>} : memref<1x128x128xbf16, #tpu.memory_space<vmem>>, vector<1x128x128xbf16>,
    return
  }
  func.func @transform_0(%arg0: i32, %arg1: i32) -> (i32, i32, i32) {
    %c0_i32 = arith.constant 0 : i32
    %c0_i32_0 = arith.constant 0 : i32
    %c0_i32_1 = arith.constant 0 : i32
    return %arg0, %c0_i32, %c0_i32_0 : i32, i32, i32
  }
  func.func @transform_1(%arg0: i32, %arg1: i32) -> (i32, i32) {
    %c0_i32 = arith.constant 0 : i32
    %c0_i32_0 = arith.constant 0 : i32
    %c0_i32_1 = arith.constant 0 : i32
    return %c0_i32, %c0_i32_0 : i32, i32
  }
  func.func @transform_2(%arg0: i32, %arg1: i32) -> (i32, i32, i32) {
    %c0_i32 = arith.constant 0 : i32
    %c0_i32_0 = arith.constant 0 : i32
    %c0_i32_1 = arith.constant 0 : i32
    %c0_i32_2 = arith.constant 0 : i32
    return %c0_i32, %c0_i32_0, %c0_i32_1 : i32, i32, i32
  }
  func.func @transform_3(%arg0: i32, %arg1: i32) -> (i32, i32) {
    %c0_i32 = arith.constant 0 : i32
    %c0_i32_0 = arith.constant 0 : i32
    %c0_i32_1 = arith.constant 0 : i32
    return %c0_i32, %c0_i32_0 : i32, i32
  }
  func.func @transform_4(%arg0: i32, %arg1: i32) -> (i32, i32, i32) {
    %c0_i32 = arith.constant 0 : i32
    %c0_i32_0 = arith.constant 0 : i32
    return %arg0, %arg1, %c0_i32 : i32, i32, i32
  }
}

</mosaic_0001>

<llo_original>
// kernel: tpu_custom_call.1
$region0: #{tpu_custom_call.1}
  #allocation0 [shape = 'u32[]', space=smem, size = 0x4, offset = 0x4, fixed_abs, tag = 'smem constant byte address 0x4 - core index']
  #allocation1 [shape = 'u32[72,128]{1,0:T(1,128)}', space=vmem, size = 0x9000, scoped, tag = 'internal scratch']
  %s0 = inlined_call_operand.vmem [shape: bf16[2,288,27], index: 0, kind: input, shape index: {}]
  %s1 = inlined_call_operand.vmem [shape: bf16[27,128], index: 1, kind: input, shape index: {}]
  %s2 = inlined_call_operand.hbm [shape: bf16[3,384,128], index: 2, kind: input, shape index: {}]
  %s3 = inlined_call_operand.vmem [shape: f32[2,128], index: 3, kind: input, shape index: {}]
  %s4 = inlined_call_operand.hbm [shape: bf16[2,256,128], index: 4, kind: output, shape index: {}]
  %s5 = sld [smem:[#allocation0]]
  $region53: #{tpu_custom_call.1} parent=0
    _
  %s7 = ssub.s32 1, %s5
  %s8 = scalar_select 0, %s7, %s5
  $region1: #{tpu_custom_call.1} parent=0
    #allocation2 [shape = 'u8[294912]{0}', space=vmem, size = 0x48000, scoped, tag = 'input window, operand 2, single buffered']
    #allocation3 [shape = 's32[2]{0}', space=sflag, size = 0x8, scoped, tag = 'scoped memory for tpu_custom_call.1']
    #allocation4 [shape = 's32[2]{0}', space=sflag, size = 0x8, scoped, tag = 'scoped memory for tpu_custom_call.1']
    #allocation5 [shape = 'u8[65536]{0}', space=vmem, size = 0x10000, scoped, tag = 'output window, operand 0']
    %9 = vsyncpa [#allocation3], 0
    %10 = vsyncpa [#allocation4], 0
    %s11 = scalar_lea.sflag [#allocation4], 1
    %12 = vsyncpa %s11, 0
    loop: start=0, step=1, limit=6
    $region2: #{tpu_custom_call.1} parent=1 // loop_pre_header
      _
    $region3: #{tpu_custom_call.1} parent=1 // loop_header
      %s14 = sphi 0, %s18
      %p15 = scmp.ge.s32.totalorder %s14, 6
      %s21 = sphi 0, %s33
      %s22 = sphi 0, %s29
      %s23 = sphi 0, %s21
      %s24 = sphi 0, %s22
      %s25 = sphi 0, %s23
      %s26 = sphi 0, %s24
      %s36 = sphi 0, %s38
      %s39 = sphi 0, %s36
      %s40 = sphi 0, %s39
      %s56 = sphi 0, %s40
      %s60 = sphi 0, %s60
      %s62 = sphi 0, %s60
      %s63 = sphi 0, %s62
      %s77 = sphi 0, %s63
      %s81 = sphi 0, %s81
      %s83 = sphi 0, %s81
      %s84 = sphi 0, %s83
      %s98 = sphi 0, %s84
      %s102 = sphi 0, %s102
      %s104 = sphi 0, %s102
      %s105 = sphi 0, %s104
      %s119 = sphi 0, %s105
      %s127 = sphi 0, %s129
      %s130 = sphi 0, %s127
      %s131 = sphi 0, %s130
      %s147 = sphi 0, %s131
    $region4: #{tpu_custom_call.1} parent=1 // loop_header_branch
      %17 = sbr.rel (%p15) target = $region8
    $region5: #{tpu_custom_call.1} parent=1 // loop_body
      %s19 = ssub.s32 %s14, 1
      %s20 = ssub.s32 %s14, 2
      %s27 = sadd.s32 1, %s22
      %p28 = scmp.ge.s32.totalorder %s27, 2
      %s29 = scalar_select %p28, 0, %s27
      %s30 = sadd.s32 1, %s21
      %s31 = scalar_select %p28, %s30, %s21
      %p32 = scmp.ge.s32.totalorder %s31, 2
      %s33 = scalar_select %p32, 0, %s31
      %s34 = ssub.s32 %s21, %s33
      %p35 = scmp.eq.s32.totalorder %s34, 0
      %s37 = sadd.s32 %s36, 1
      %s38 = scalar_select %p35, %s36, %s37
      %p41 = pneg %p35
      %p42 = scmp.eq.s32.totalorder %s14, 3
      %p43 = por %p41, %p42
      %p44 = scmp.ne.s32.totalorder %s36, %s39
      %p45 = scmp.eq.s32.totalorder %s14, 0
      %p46 = por %p44, %p45
      %p47 = scmp.ne.s32.totalorder %s36, %s39
      %p48 = scmp.eq.s32.totalorder %s19, 3
      %p49 = por %p47, %p48
      %p50 = scmp.ne.s32.totalorder %s39, %s40
      %p51 = scmp.eq.s32.totalorder %s19, 0
      %p52 = por %p50, %p51
      %p53 = scmp.ne.s32.totalorder %s39, %s40
      %p54 = scmp.eq.s32.totalorder %s20, 3
      %p55 = por %p53, %p54
      %p57 = scmp.ne.s32.totalorder %s40, %s56
      %p58 = scmp.eq.s32.totalorder %s20, 0
      %p59 = por %p57, %p58
      %s61 = sadd.s32 %s60, 1
      %p64 = scmp.eq.s32.totalorder %s14, 3
      %p65 = scmp.ne.s32.totalorder %s60, %s62
      %p66 = scmp.eq.s32.totalorder %s14, 0
      %p67 = por %p65, %p66
      %p68 = scmp.ne.s32.totalorder %s60, %s62
      %p69 = scmp.eq.s32.totalorder %s19, 3
      %p70 = por %p68, %p69
      %p71 = scmp.ne.s32.totalorder %s62, %s63
      %p72 = scmp.eq.s32.totalorder %s19, 0
      %p73 = por %p71, %p72
      %p74 = scmp.ne.s32.totalorder %s62, %s63
      %p75 = scmp.eq.s32.totalorder %s20, 3
      %p76 = por %p74, %p75
      %p78 = scmp.ne.s32.totalorder %s63, %s77
      %p79 = scmp.eq.s32.totalorder %s20, 0
      %p80 = por %p78, %p79
      %s82 = sadd.s32 %s81, 1
      %p85 = scmp.eq.s32.totalorder %s14, 3
      %p86 = scmp.ne.s32.totalorder %s81, %s83
      %p87 = scmp.eq.s32.totalorder %s14, 0
      %p88 = por %p86, %p87
      %p89 = scmp.ne.s32.totalorder %s81, %s83
      %p90 = scmp.eq.s32.totalorder %s19, 3
      %p91 = por %p89, %p90
      %p92 = scmp.ne.s32.totalorder %s83, %s84
      %p93 = scmp.eq.s32.totalorder %s19, 0
      %p94 = por %p92, %p93
      %p95 = scmp.ne.s32.totalorder %s83, %s84
      %p96 = scmp.eq.s32.totalorder %s20, 3
      %p97 = por %p95, %p96
      %p99 = scmp.ne.s32.totalorder %s84, %s98
      %p100 = scmp.eq.s32.totalorder %s20, 0
      %p101 = por %p99, %p100
      %s103 = sadd.s32 %s102, 1
      %p106 = scmp.eq.s32.totalorder %s14, 3
      %p107 = scmp.ne.s32.totalorder %s102, %s104
      %p108 = scmp.eq.s32.totalorder %s14, 0
      %p109 = por %p107, %p108
      %p110 = scmp.ne.s32.totalorder %s102, %s104
      %p111 = scmp.eq.s32.totalorder %s19, 3
      %p112 = por %p110, %p111
      %p113 = scmp.ne.s32.totalorder %s104, %s105
      %p114 = scmp.eq.s32.totalorder %s19, 0
      %p115 = por %p113, %p114
      %p116 = scmp.ne.s32.totalorder %s104, %s105
      %p117 = scmp.eq.s32.totalorder %s20, 3
      %p118 = por %p116, %p117
      %p120 = scmp.ne.s32.totalorder %s105, %s119
      %p121 = scmp.eq.s32.totalorder %s20, 0
      %p122 = por %p120, %p121
      %s123 = ssub.s32 %s21, %s33
      %s124 = ssub.s32 %s22, %s29
      %s125 = sor.u32 %s123, %s124
      %p126 = scmp.eq.s32.totalorder %s125, 0
      %s128 = sadd.s32 %s127, 1
      %s129 = scalar_select %p126, %s127, %s128
      %p132 = pneg %p126
      %p133 = scmp.eq.s32.totalorder %s14, 3
      %p134 = por %p132, %p133
      %p135 = scmp.ne.s32.totalorder %s127, %s130
      %p136 = scmp.eq.s32.totalorder %s14, 0
      %p137 = por %p135, %p136
      %p138 = scmp.ne.s32.totalorder %s127, %s130
      %p139 = scmp.eq.s32.totalorder %s19, 3
      %p140 = por %p138, %p139
      %p141 = scmp.ne.s32.totalorder %s130, %s131
      %p142 = scmp.eq.s32.totalorder %s19, 0
      %p143 = por %p141, %p142
      %p144 = scmp.ne.s32.totalorder %s130, %s131
      %p145 = scmp.eq.s32.totalorder %s20, 3
      %p146 = por %p144, %p145
      %p148 = scmp.ne.s32.totalorder %s131, %s147
      %p149 = scmp.eq.s32.totalorder %s20, 0
      %p150 = por %p148, %p149
      %p151 = scmp.le.s32.totalorder 1, %s14
      %p152 = scmp.lt.s32.totalorder %s14, 5
      %p153 = pnand %p151, %p152
      %p154 = pneg %p153
      // Predicated region
      $region9: #{tpu_custom_call.1} parent=5 // pred_check
        _
      $region10: #{tpu_custom_call.1} parent=5 // pred_check_branch
        %156 = sbr.rel (%p153) target = $region12
      $region11: #{tpu_custom_call.1} parent=5 // pred_region
        %s157 = ssub.s32 %s14, 1
        // Predicated region
        $region13: #{tpu_custom_call.1} parent=11 // pred_check
          %p158 = pneg %p73
        $region14: #{tpu_custom_call.1} parent=11 // pred_check_branch
          %160 = sbr.rel (%p158) target = $region16
        $region15: #{tpu_custom_call.1} parent=11 // pred_region
          _
        $region16: #{tpu_custom_call.1} parent=11 // pred_fallthru
          _
        // Predicated region
        $region17: #{tpu_custom_call.1} parent=11 // pred_check
          %p161 = pneg %p94
        $region18: #{tpu_custom_call.1} parent=11 // pred_check_branch
          %163 = sbr.rel (%p161) target = $region20
        $region19: #{tpu_custom_call.1} parent=11 // pred_region
          %165 = vsyncadd [#allocation3], 0
          %s166 = sshll.u32 %s2, 4
          %s167 = int_to_ptr.hbm [resolvable:$true] %s166
          %s168 = sshll.u32 [#allocation2], 4
          %s169 = int_to_ptr.vmem [resolvable:$true] %s168
          %174 = dma.hbm_to_vmem [thread:$0]  %s167, 9216, %s169, [#allocation3], 64, 64, 4
        $region20: #{tpu_custom_call.1} parent=11 // pred_fallthru
          _
        // Predicated region
        $region21: #{tpu_custom_call.1} parent=11 // pred_check
          %p175 = pneg %p115
        $region22: #{tpu_custom_call.1} parent=11 // pred_check_branch
          %177 = sbr.rel (%p175) target = $region24
        $region23: #{tpu_custom_call.1} parent=11 // pred_region
          _
        $region24: #{tpu_custom_call.1} parent=11 // pred_fallthru
          _
      $region12: #{tpu_custom_call.1} parent=5 // pred_fallthru
        _
      %p178 = scmp.lt.s32.totalorder %s14, 4
      // Predicated region
      $region25: #{tpu_custom_call.1} parent=5 // pred_check
        %p179 = pneg %p178
      $region26: #{tpu_custom_call.1} parent=5 // pred_check_branch
        %181 = sbr.rel (%p179) target = $region28
      $region27: #{tpu_custom_call.1} parent=5 // pred_region
        // Predicated region
        $region29: #{tpu_custom_call.1} parent=27 // pred_check
          %p182 = pneg %p46
        $region30: #{tpu_custom_call.1} parent=27 // pred_check_branch
          %184 = sbr.rel (%p182) target = $region32
        $region31: #{tpu_custom_call.1} parent=27 // pred_region
          %p185 = scmp.lt.s32.totalorder %s21, 1
          %s186 = scalar_select %p185, %s21, 1
          %s187 = smul.addr %s186, 36
          %s188 = smul.addr %s187, 4
          %s189 = scalar_lea.vmem %s0, %s188
        $region32: #{tpu_custom_call.1} parent=27 // pred_fallthru
          _
      $region28: #{tpu_custom_call.1} parent=5 // pred_fallthru
        _
      %p190 = scmp.le.s32.totalorder 1, %s14
      %p191 = scmp.lt.s32.totalorder %s14, 5
      %p192 = pnand %p190, %p191
      %p193 = pneg %p192
      // Predicated region
      $region33: #{tpu_custom_call.1} parent=5 // pred_check
        _
      $region34: #{tpu_custom_call.1} parent=5 // pred_check_branch
        %195 = sbr.rel (%p192) target = $region36
      $region35: #{tpu_custom_call.1} parent=5 // pred_region
        %s196 = ssub.s32 %s14, 1
        // Predicated region
        $region37: #{tpu_custom_call.1} parent=35 // pred_check
          %p197 = pneg %p94
        $region38: #{tpu_custom_call.1} parent=35 // pred_check_branch
          %199 = sbr.rel (%p197) target = $region40
        $region39: #{tpu_custom_call.1} parent=35 // pred_region
          %201 = dma.done [#allocation3], 9216
        $region40: #{tpu_custom_call.1} parent=35 // pred_fallthru
          _
        %p202 = scmp.lt.s32.totalorder %s23, 1
        %s203 = scalar_select %p202, %s23, 1
        %s204 = smul.addr %s203, 36
        %s205 = smul.addr %s204, 4
        %s206 = scalar_lea.vmem %s0, %s205
        %p207 = pneg %p52
        %p208 = pneg %p49
        %p209 = pneg %p73
        %p210 = pneg %p70
        %p211 = pneg %p94
        %p212 = pneg %p91
        %p213 = pneg %p115
        %p214 = pneg %p112
        %p215 = pneg %p143
        %p216 = pneg %p140
        %s217 = sand.u32 %s130, 1
        %s218 = scalar_lea.sflag [#allocation4], %s217
        %s219 = sand.u32 %s130, 1
        %s220 = smul.addr %s219, 64
        %s221 = scalar_lea.vmem [#allocation5], %s220
        %p222 = scmp.lt.s32.totalorder %s23, 1
        %s223 = scalar_select %p222, %s23, 1
        %s224 = smul.addr %s223, 36
        %s225 = smul.addr %s224, 4
        %s226 = scalar_lea.vmem %s0, %s225
        %s227 = smul.u32 16, %s24
        %s229 = smul.u32 %s24, 8
        %s230 = smul.u32 %s24, 128
        %s231 = sshra.s32 %s230, 3
        %s232 = sand.u32 %s230, 7
        %s233 = smul.addr %s231, 4
        %s234 = scalar_lea.vmem %s226, %s233
        %v235 = vld [vmem:[%s234] sm:$0xf]
        %v236 = vld [vmem:[%s234 + $0x4] sm:$0xf]
        %v237 = vld [vmem:[%s234 + $0x8] sm:$0xf]
        %v238 = vld [vmem:[%s234 + $0xc] sm:$0xf]
        %v239 = vld [vmem:[%s234 + $0x10] sm:$0xf]
        %v240 = vld [vmem:[%s234 + $0x14] sm:$0xf]
        %v241 = vld [vmem:[%s234 + $0x18] sm:$0xf]
        %v242 = vld [vmem:[%s234 + $0x1c] sm:$0xf]
        %v243 = vld [vmem:[%s234 + $0x20] sm:$0xf]
        %v244 = vld [vmem:[%s234 + $0x24] sm:$0xf]
        %v245 = vld [vmem:[%s234 + $0x28] sm:$0xf]
        %v246 = vld [vmem:[%s234 + $0x2c] sm:$0xf]
        %v247 = vld [vmem:[%s234 + $0x30] sm:$0xf]
        %v248 = vld [vmem:[%s234 + $0x34] sm:$0xf]
        %v249 = vld [vmem:[%s234 + $0x38] sm:$0xf]
        %v250 = vld [vmem:[%s234 + $0x3c] sm:$0xf]
        %v251 = vld [vmem:[%s234 + $0x40] sm:$0xf]
        %v252 = vld [vmem:[%s234 + $0x44] sm:$0xf]
        %v253 = vld [vmem:[%s234 + $0x48] sm:$0xf]
        %v254 = vld [vmem:[%s234 + $0x4c] sm:$0xf]
        %v255 = vld [vmem:[%s1] sm:$0xf]
        %v256 = vld [vmem:[%s1 + $0x4] sm:$0xf]
        %v257 = vld [vmem:[%s1 + $0x8] sm:$0xf]
        %v258 = vld [vmem:[%s1 + $0xc] sm:$0x3]
        %v279 = vunpack.c.l.b16 %v235
        %v280 = vunpack.c.l.b16 %v236
        %v281 = vunpack.c.l.b16 %v237
        %v282 = vunpack.c.l.b16 %v238
        %v283 = vunpack.c.l.b16 %v239
        %v284 = vunpack.c.l.b16 %v240
        %v285 = vunpack.c.l.b16 %v241
        %v286 = vunpack.c.l.b16 %v242
        %v287 = vunpack.c.l.b16 %v243
        %v288 = vunpack.c.l.b16 %v244
        %v289 = vunpack.c.l.b16 %v245
        %v290 = vunpack.c.l.b16 %v246
        %v291 = vunpack.c.l.b16 %v247
        %v292 = vunpack.c.l.b16 %v248
        %v293 = vunpack.c.l.b16 %v249
        %v294 = vunpack.c.l.b16 %v250
        %v295 = vunpack.c.l.b16 %v251
        %v296 = vunpack.c.l.b16 %v252
        %v297 = vunpack.c.l.b16 %v253
        %v298 = vunpack.c.l.b16 %v254
        %v299 = vpack.c.b16 %v280, %v279
        %v300 = vpack.c.b16 %v282, %v281
        %v301 = vpack.c.b16 %v284, %v283
        %v302 = vpack.c.b16 %v286, %v285
        %v303 = vpack.c.b16 %v288, %v287
        %v304 = vpack.c.b16 %v290, %v289
        %v305 = vpack.c.b16 %v292, %v291
        %v306 = vpack.c.b16 %v294, %v293
        %v307 = vpack.c.b16 %v296, %v295
        %v308 = vpack.c.b16 %v298, %v297
        %v313 = vunpack.c.l.b16 %v255
        %v314 = vunpack.c.l.b16 %v256
        %v315 = vunpack.c.l.b16 %v257
        %v316 = vunpack.c.l.b16 %v258
        %v317 = vpack.c.b16 %v314, %v313
        %v318 = vpack.c.b16 %v316, %v315
        %vm320 = vcmask 220160
        %v322 = vsel %vm320, %v299, 0
        %v325 = vsel %vm320, %v300, 0
        %v328 = vsel %vm320, %v301, 0
        %v331 = vsel %vm320, %v302, 0
        %v334 = vsel %vm320, %v303, 0
        %v337 = vsel %vm320, %v304, 0
        %v340 = vsel %vm320, %v305, 0
        %v343 = vsel %vm320, %v306, 0
        %v346 = vsel %vm320, %v307, 0
        %v349 = vsel %vm320, %v308, 0
        %vm351 = vcmask 1044480
        %vm352 = vcmask 1045504
        %v353 = vsel %vm351, 4294967295, 65535
        %v354 = vsel %vm352, %v353, 0
        %v356 = vand.u32 %v318, %v354
        %358 = vmatpush.bf16.msra.mxu0 0
        %359 = vmatpush.bf16.msra.mxu0 0
        %360 = vmatpush.bf16.msra.mxu0 0
        %361 = vmatpush.bf16.msra.mxu0 0
        %362 = vmatpush.bf16.msra.mxu0 0
        %363 = vmatpush.bf16.msra.mxu0 0
        %364 = vmatpush.bf16.msra.mxu0 %v356
        %365 = vmatpush.bf16.msra.mxu0 %v317
        %366 = vmatmul.bf16.gmra.mxu0 %v322
        %v367 = vpop.f32.mrf.mxu0
        %v368 = vadd.f32 0.0, %v367
        %v369 = vpop.f32.mrf.mxu0
        %v370 = vadd.f32 0.0, %v369
        %371 = vmatmul.bf16.gmra.mxu0 %v325
        %v372 = vpop.f32.mrf.mxu0
        %v373 = vadd.f32 0.0, %v372
        %v374 = vpop.f32.mrf.mxu0
        %v375 = vadd.f32 0.0, %v374
        %376 = vmatmul.bf16.gmra.mxu0 %v328
        %v377 = vpop.f32.mrf.mxu0
        %v378 = vadd.f32 0.0, %v377
        %v379 = vpop.f32.mrf.mxu0
        %v380 = vadd.f32 0.0, %v379
        %381 = vmatmul.bf16.gmra.mxu0 %v331
        %v382 = vpop.f32.mrf.mxu0
        %v383 = vadd.f32 0.0, %v382
        %v384 = vpop.f32.mrf.mxu0
        %v385 = vadd.f32 0.0, %v384
        %386 = vmatmul.bf16.gmra.mxu0 %v334
        %v387 = vpop.f32.mrf.mxu0
        %v388 = vadd.f32 0.0, %v387
        %v389 = vpop.f32.mrf.mxu0
        %v390 = vadd.f32 0.0, %v389
        %391 = vmatmul.bf16.gmra.mxu0 %v337
        %v392 = vpop.f32.mrf.mxu0
        %v393 = vadd.f32 0.0, %v392
        %v394 = vpop.f32.mrf.mxu0
        %v395 = vadd.f32 0.0, %v394
        %396 = vmatmul.bf16.gmra.mxu0 %v340
        %v397 = vpop.f32.mrf.mxu0
        %v398 = vadd.f32 0.0, %v397
        %v399 = vpop.f32.mrf.mxu0
        %v400 = vadd.f32 0.0, %v399
        %401 = vmatmul.bf16.gmra.mxu0 %v343
        %v402 = vpop.f32.mrf.mxu0
        %v403 = vadd.f32 0.0, %v402
        %v404 = vpop.f32.mrf.mxu0
        %v405 = vadd.f32 0.0, %v404
        %406 = vmatmul.bf16.gmra.mxu0 %v346
        %v407 = vpop.f32.mrf.mxu0
        %v408 = vadd.f32 0.0, %v407
        %v409 = vpop.f32.mrf.mxu0
        %v410 = vadd.f32 0.0, %v409
        %411 = vmatmul.bf16.gmra.mxu0 %v349
        %v412 = vpop.f32.mrf.mxu0
        %v413 = vadd.f32 0.0, %v412
        %v414 = vpop.f32.mrf.mxu0
        %v415 = vadd.f32 0.0, %v414
        %416 = vdwg.mxu0
        %v417 = vld [vmem:[%s3] sm:$0x1]
        %v418 = vperm.slane %v417, 0
        %v419 = vmul.f32 %v368, %v418
        %v420 = vmul.f32 %v370, %v418
        %v421 = vmul.f32 %v373, %v418
        %v422 = vmul.f32 %v375, %v418
        %v423 = vmul.f32 %v378, %v418
        %v424 = vmul.f32 %v380, %v418
        %v425 = vmul.f32 %v383, %v418
        %v426 = vmul.f32 %v385, %v418
        %v427 = vmul.f32 %v388, %v418
        %v428 = vmul.f32 %v390, %v418
        %v429 = vmul.f32 %v393, %v418
        %v430 = vmul.f32 %v395, %v418
        %v431 = vmul.f32 %v398, %v418
        %v432 = vmul.f32 %v400, %v418
        %v433 = vmul.f32 %v403, %v418
        %v434 = vmul.f32 %v405, %v418
        %v435 = vmul.f32 %v408, %v418
        %v436 = vmul.f32 %v410, %v418
        %v437 = vmul.f32 %v413, %v418
        %v438 = vmul.f32 %v415, %v418
        %v439 = vld [vmem:[%s3 + $0x1] sm:$0x1]
        %v440 = vperm.slane %v439, 0
        %v441 = vadd.f32 %v419, %v440
        %v442 = vadd.f32 %v420, %v440
        %v443 = vadd.f32 %v421, %v440
        %v444 = vadd.f32 %v422, %v440
        %v445 = vadd.f32 %v423, %v440
        %v446 = vadd.f32 %v424, %v440
        %v447 = vadd.f32 %v425, %v440
        %v448 = vadd.f32 %v426, %v440
        %v449 = vadd.f32 %v427, %v440
        %v450 = vadd.f32 %v428, %v440
        %v451 = vadd.f32 %v429, %v440
        %v452 = vadd.f32 %v430, %v440
        %v453 = vadd.f32 %v431, %v440
        %v454 = vadd.f32 %v432, %v440
        %v455 = vadd.f32 %v433, %v440
        %v456 = vadd.f32 %v434, %v440
        %v457 = vadd.f32 %v435, %v440
        %v458 = vadd.f32 %v436, %v440
        %v459 = vadd.f32 %v437, %v440
        %v460 = vadd.f32 %v438, %v440
        %v461 = vmul.f32 %v441, 0.5
        %v462 = vmul.f32 %v442, 0.5
        %v463 = vmul.f32 %v443, 0.5
        %v464 = vmul.f32 %v444, 0.5
        %v465 = vmul.f32 %v445, 0.5
        %v466 = vmul.f32 %v446, 0.5
        %v467 = vmul.f32 %v447, 0.5
        %v468 = vmul.f32 %v448, 0.5
        %v469 = vmul.f32 %v449, 0.5
        %v470 = vmul.f32 %v450, 0.5
        %v471 = vmul.f32 %v451, 0.5
        %v472 = vmul.f32 %v452, 0.5
        %v473 = vmul.f32 %v453, 0.5
        %v474 = vmul.f32 %v454, 0.5
        %v475 = vmul.f32 %v455, 0.5
        %v476 = vmul.f32 %v456, 0.5
        %v477 = vmul.f32 %v457, 0.5
        %v478 = vmul.f32 %v458, 0.5
        %v479 = vmul.f32 %v459, 0.5
        %v480 = vmul.f32 %v460, 0.5
        %v481 = vmul.f32 %v441, 0.044715
        %v482 = vmul.f32 %v442, 0.044715
        %v483 = vmul.f32 %v443, 0.044715
        %v484 = vmul.f32 %v444, 0.044715
        %v485 = vmul.f32 %v445, 0.044715
        %v486 = vmul.f32 %v446, 0.044715
        %v487 = vmul.f32 %v447, 0.044715
        %v488 = vmul.f32 %v448, 0.044715
        %v489 = vmul.f32 %v449, 0.044715
        %v490 = vmul.f32 %v450, 0.044715
        %v491 = vmul.f32 %v451, 0.044715
        %v492 = vmul.f32 %v452, 0.044715
        %v493 = vmul.f32 %v453, 0.044715
        %v494 = vmul.f32 %v454, 0.044715
        %v495 = vmul.f32 %v455, 0.044715
        %v496 = vmul.f32 %v456, 0.044715
        %v497 = vmul.f32 %v457, 0.044715
        %v498 = vmul.f32 %v458, 0.044715
        %v499 = vmul.f32 %v459, 0.044715
        %v500 = vmul.f32 %v460, 0.044715
        %v501 = vmul.f32 %v481, %v441
        %v502 = vmul.f32 %v482, %v442
        %v503 = vmul.f32 %v483, %v443
        %v504 = vmul.f32 %v484, %v444
        %v505 = vmul.f32 %v485, %v445
        %v506 = vmul.f32 %v486, %v446
        %v507 = vmul.f32 %v487, %v447
        %v508 = vmul.f32 %v488, %v448
        %v509 = vmul.f32 %v489, %v449
        %v510 = vmul.f32 %v490, %v450
        %v511 = vmul.f32 %v491, %v451
        %v512 = vmul.f32 %v492, %v452
        %v513 = vmul.f32 %v493, %v453
        %v514 = vmul.f32 %v494, %v454
        %v515 = vmul.f32 %v495, %v455
        %v516 = vmul.f32 %v496, %v456
        %v517 = vmul.f32 %v497, %v457
        %v518 = vmul.f32 %v498, %v458
        %v519 = vmul.f32 %v499, %v459
        %v520 = vmul.f32 %v500, %v460
        %v521 = vmul.f32 %v501, %v441
        %v522 = vmul.f32 %v502, %v442
        %v523 = vmul.f32 %v503, %v443
        %v524 = vmul.f32 %v504, %v444
        %v525 = vmul.f32 %v505, %v445
        %v526 = vmul.f32 %v506, %v446
        %v527 = vmul.f32 %v507, %v447
        %v528 = vmul.f32 %v508, %v448
        %v529 = vmul.f32 %v509, %v449
        %v530 = vmul.f32 %v510, %v450
        %v531 = vmul.f32 %v511, %v451
        %v532 = vmul.f32 %v512, %v452
        %v533 = vmul.f32 %v513, %v453
        %v534 = vmul.f32 %v514, %v454
        %v535 = vmul.f32 %v515, %v455
        %v536 = vmul.f32 %v516, %v456
        %v537 = vmul.f32 %v517, %v457
        %v538 = vmul.f32 %v518, %v458
        %v539 = vmul.f32 %v519, %v459
        %v540 = vmul.f32 %v520, %v460
        %v541 = vadd.f32 %v441, %v521
        %v542 = vadd.f32 %v442, %v522
        %v543 = vadd.f32 %v443, %v523
        %v544 = vadd.f32 %v444, %v524
        %v545 = vadd.f32 %v445, %v525
        %v546 = vadd.f32 %v446, %v526
        %v547 = vadd.f32 %v447, %v527
        %v548 = vadd.f32 %v448, %v528
        %v549 = vadd.f32 %v449, %v529
        %v550 = vadd.f32 %v450, %v530
        %v551 = vadd.f32 %v451, %v531
        %v552 = vadd.f32 %v452, %v532
        %v553 = vadd.f32 %v453, %v533
        %v554 = vadd.f32 %v454, %v534
        %v555 = vadd.f32 %v455, %v535
        %v556 = vadd.f32 %v456, %v536
        %v557 = vadd.f32 %v457, %v537
        %v558 = vadd.f32 %v458, %v538
        %v559 = vadd.f32 %v459, %v539
        %v560 = vadd.f32 %v460, %v540
        %v561 = vmul.f32 %v541, 0.7978846
        %v562 = vmul.f32 %v542, 0.7978846
        %v563 = vmul.f32 %v543, 0.7978846
        %v564 = vmul.f32 %v544, 0.7978846
        %v565 = vmul.f32 %v545, 0.7978846
        %v566 = vmul.f32 %v546, 0.7978846
        %v567 = vmul.f32 %v547, 0.7978846
        %v568 = vmul.f32 %v548, 0.7978846
        %v569 = vmul.f32 %v549, 0.7978846
        %v570 = vmul.f32 %v550, 0.7978846
        %v571 = vmul.f32 %v551, 0.7978846
        %v572 = vmul.f32 %v552, 0.7978846
        %v573 = vmul.f32 %v553, 0.7978846
        %v574 = vmul.f32 %v554, 0.7978846
        %v575 = vmul.f32 %v555, 0.7978846
        %v576 = vmul.f32 %v556, 0.7978846
        %v577 = vmul.f32 %v557, 0.7978846
        %v578 = vmul.f32 %v558, 0.7978846
        %v579 = vmul.f32 %v559, 0.7978846
        %v580 = vmul.f32 %v560, 0.7978846
        %v581 = vtanh.pop %v561
        %v582 = vtanh.pop %v562
        %v583 = vtanh.pop %v563
        %v584 = vtanh.pop %v564
        %v585 = vtanh.pop %v565
        %v586 = vtanh.pop %v566
        %v587 = vtanh.pop %v567
        %v588 = vtanh.pop %v568
        %v589 = vtanh.pop %v569
        %v590 = vtanh.pop %v570
        %v591 = vtanh.pop %v571
        %v592 = vtanh.pop %v572
        %v593 = vtanh.pop %v573
        %v594 = vtanh.pop %v574
        %v595 = vtanh.pop %v575
        %v596 = vtanh.pop %v576
        %v597 = vtanh.pop %v577
        %v598 = vtanh.pop %v578
        %v599 = vtanh.pop %v579
        %v600 = vtanh.pop %v580
        %v601 = vadd.f32 %v581, 1.0
        %v602 = vadd.f32 %v582, 1.0
        %v603 = vadd.f32 %v583, 1.0
        %v604 = vadd.f32 %v584, 1.0
        %v605 = vadd.f32 %v585, 1.0
        %v606 = vadd.f32 %v586, 1.0
        %v607 = vadd.f32 %v587, 1.0
        %v608 = vadd.f32 %v588, 1.0
        %v609 = vadd.f32 %v589, 1.0
        %v610 = vadd.f32 %v590, 1.0
        %v611 = vadd.f32 %v591, 1.0
        %v612 = vadd.f32 %v592, 1.0
        %v613 = vadd.f32 %v593, 1.0
        %v614 = vadd.f32 %v594, 1.0
        %v615 = vadd.f32 %v595, 1.0
        %v616 = vadd.f32 %v596, 1.0
        %v617 = vadd.f32 %v597, 1.0
        %v618 = vadd.f32 %v598, 1.0
        %v619 = vadd.f32 %v599, 1.0
        %v620 = vadd.f32 %v600, 1.0
        %v621 = vmul.f32 %v461, %v601
        %v622 = vmul.f32 %v462, %v602
        %v623 = vmul.f32 %v463, %v603
        %v624 = vmul.f32 %v464, %v604
        %v625 = vmul.f32 %v465, %v605
        %v626 = vmul.f32 %v466, %v606
        %v627 = vmul.f32 %v467, %v607
        %v628 = vmul.f32 %v468, %v608
        %v629 = vmul.f32 %v469, %v609
        %v630 = vmul.f32 %v470, %v610
        %v631 = vmul.f32 %v471, %v611
        %v632 = vmul.f32 %v472, %v612
        %v633 = vmul.f32 %v473, %v613
        %v634 = vmul.f32 %v474, %v614
        %v635 = vmul.f32 %v475, %v615
        %v636 = vmul.f32 %v476, %v616
        %v637 = vmul.f32 %v477, %v617
        %v638 = vmul.f32 %v478, %v618
        %v639 = vmul.f32 %v479, %v619
        %v640 = vmul.f32 %v480, %v620
        %v641 = vlaneseq
        %v642 = vshrl.u32 %v641, 7
        %v643 = vadd.s32 %v642, 8
        %v644 = vadd.s32 %v642, 16
        %v645 = vadd.s32 %v642, 24
        %v646 = vadd.s32 %v642, 32
        %v647 = vadd.s32 %v642, 40
        %v648 = vadd.s32 %v642, 48
        %v649 = vadd.s32 %v642, 56
        %v650 = vadd.s32 %v642, 64
        %v651 = vadd.s32 %v642, 72
        %v652 = vadd.s32 %v642, 80
        %v653 = vadd.s32 %v642, 88
        %v654 = vadd.s32 %v642, 96
        %v655 = vadd.s32 %v642, 104
        %v656 = vadd.s32 %v642, 112
        %v657 = vadd.s32 %v642, 120
        %v658 = vadd.s32 %v642, 128
        %v659 = vadd.s32 %v642, 136
        %v660 = vadd.s32 %v642, 144
        %v661 = vadd.s32 %v642, 152
        %p662 = scmp.eq.s32.totalorder %s229, 0
        %vm663 = vcmp.lt.s32.totalorder %v642, 16
        %vm664 = vcmp.lt.s32.totalorder %v643, 16
        %vm665 = vcmp.lt.s32.totalorder %v644, 16
        %vm666 = vcmp.lt.s32.totalorder %v645, 16
        %vm667 = vcmp.lt.s32.totalorder %v646, 16
        %vm668 = vcmp.lt.s32.totalorder %v647, 16
        %vm669 = vcmp.lt.s32.totalorder %v648, 16
        %vm670 = vcmp.lt.s32.totalorder %v649, 16
        %vm671 = vcmp.lt.s32.totalorder %v650, 16
        %vm672 = vcmp.lt.s32.totalorder %v651, 16
        %vm673 = vcmp.lt.s32.totalorder %v652, 16
        %vm674 = vcmp.lt.s32.totalorder %v653, 16
        %vm675 = vcmp.lt.s32.totalorder %v654, 16
        %vm676 = vcmp.lt.s32.totalorder %v655, 16
        %vm677 = vcmp.lt.s32.totalorder %v656, 16
        %vm678 = vcmp.lt.s32.totalorder %v657, 16
        %vm679 = vcmp.lt.s32.totalorder %v658, 16
        %vm680 = vcmp.lt.s32.totalorder %v659, 16
        %vm681 = vcmp.lt.s32.totalorder %v660, 16
        %vm682 = vcmp.lt.s32.totalorder %v661, 16
        %s683 = scalar_select %p662, 1, 0
        %v684 = vstv %s683
        %vm685 = vcmp.eq.s32.totalorder %v684, 1
        %vm686 = vmand %vm685, %vm663
        %vm687 = vmand %vm685, %vm664
        %vm688 = vmand %vm685, %vm665
        %vm689 = vmand %vm685, %vm666
        %vm690 = vmand %vm685, %vm667
        %vm691 = vmand %vm685, %vm668
        %vm692 = vmand %vm685, %vm669
        %vm693 = vmand %vm685, %vm670
        %vm694 = vmand %vm685, %vm671
        %vm695 = vmand %vm685, %vm672
        %vm696 = vmand %vm685, %vm673
        %vm697 = vmand %vm685, %vm674
        %vm698 = vmand %vm685, %vm675
        %vm699 = vmand %vm685, %vm676
        %vm700 = vmand %vm685, %vm677
        %vm701 = vmand %vm685, %vm678
        %vm702 = vmand %vm685, %vm679
        %vm703 = vmand %vm685, %vm680
        %vm704 = vmand %vm685, %vm681
        %vm705 = vmand %vm685, %vm682
        %s706 = sadd.s32 %s229, 8
        %p707 = scmp.eq.s32.totalorder %s706, 16
        %vm708 = vcmp.ge.s32.totalorder %v642, 144
        %vm709 = vcmp.ge.s32.totalorder %v643, 144
        %vm710 = vcmp.ge.s32.totalorder %v644, 144
        %vm711 = vcmp.ge.s32.totalorder %v645, 144
        %vm712 = vcmp.ge.s32.totalorder %v646, 144
        %vm713 = vcmp.ge.s32.totalorder %v647, 144
        %vm714 = vcmp.ge.s32.totalorder %v648, 144
        %vm715 = vcmp.ge.s32.totalorder %v649, 144
        %vm716 = vcmp.ge.s32.totalorder %v650, 144
        %vm717 = vcmp.ge.s32.totalorder %v651, 144
        %vm718 = vcmp.ge.s32.totalorder %v652, 144
        %vm719 = vcmp.ge.s32.totalorder %v653, 144
        %vm720 = vcmp.ge.s32.totalorder %v654, 144
        %vm721 = vcmp.ge.s32.totalorder %v655, 144
        %vm722 = vcmp.ge.s32.totalorder %v656, 144
        %vm723 = vcmp.ge.s32.totalorder %v657, 144
        %vm724 = vcmp.ge.s32.totalorder %v658, 144
        %vm725 = vcmp.ge.s32.totalorder %v659, 144
        %vm726 = vcmp.ge.s32.totalorder %v660, 144
        %vm727 = vcmp.ge.s32.totalorder %v661, 144
        %s728 = scalar_select %p707, 1, 0
        %v729 = vstv %s728
        %vm730 = vcmp.eq.s32.totalorder %v729, 1
        %vm731 = vmand %vm730, %vm708
        %vm732 = vmand %vm730, %vm709
        %vm733 = vmand %vm730, %vm710
        %vm734 = vmand %vm730, %vm711
        %vm735 = vmand %vm730, %vm712
        %vm736 = vmand %vm730, %vm713
        %vm737 = vmand %vm730, %vm714
        %vm738 = vmand %vm730, %vm715
        %vm739 = vmand %vm730, %vm716
        %vm740 = vmand %vm730, %vm717
        %vm741 = vmand %vm730, %vm718
        %vm742 = vmand %vm730, %vm719
        %vm743 = vmand %vm730, %vm720
        %vm744 = vmand %vm730, %vm721
        %vm745 = vmand %vm730, %vm722
        %vm746 = vmand %vm730, %vm723
        %vm747 = vmand %vm730, %vm724
        %vm748 = vmand %vm730, %vm725
        %vm749 = vmand %vm730, %vm726
        %vm750 = vmand %vm730, %vm727
        %vm751 = vmor %vm686, %vm731
        %vm752 = vmor %vm687, %vm732
        %vm753 = vmor %vm688, %vm733
        %vm754 = vmor %vm689, %vm734
        %vm755 = vmor %vm690, %vm735
        %vm756 = vmor %vm691, %vm736
        %vm757 = vmor %vm692, %vm737
        %vm758 = vmor %vm693, %vm738
        %vm759 = vmor %vm694, %vm739
        %vm760 = vmor %vm695, %vm740
        %vm761 = vmor %vm696, %vm741
        %vm762 = vmor %vm697, %vm742
        %vm763 = vmor %vm698, %vm743
        %vm764 = vmor %vm699, %vm744
        %vm765 = vmor %vm700, %vm745
        %vm766 = vmor %vm701, %vm746
        %vm767 = vmor %vm702, %vm747
        %vm768 = vmor %vm703, %vm748
        %vm769 = vmor %vm704, %vm749
        %vm770 = vmor %vm705, %vm750
        %v771 = vsel %vm751, 1, 0
        %v772 = vsel %vm752, 1, 0
        %v773 = vsel %vm753, 1, 0
        %v774 = vsel %vm754, 1, 0
        %v775 = vsel %vm755, 1, 0
        %v776 = vsel %vm756, 1, 0
        %v777 = vsel %vm757, 1, 0
        %v778 = vsel %vm758, 1, 0
        %v779 = vsel %vm759, 1, 0
        %v780 = vsel %vm760, 1, 0
        %v781 = vsel %vm761, 1, 0
        %v782 = vsel %vm762, 1, 0
        %v783 = vsel %vm763, 1, 0
        %v784 = vsel %vm764, 1, 0
        %v785 = vsel %vm765, 1, 0
        %v786 = vsel %vm766, 1, 0
        %v787 = vsel %vm767, 1, 0
        %v788 = vsel %vm768, 1, 0
        %v789 = vsel %vm769, 1, 0
        %v790 = vsel %vm770, 1, 0
        %vm791 = vcmp.eq.s32.totalorder %v771, 1
        %vm792 = vcmp.eq.s32.totalorder %v772, 1
        %vm793 = vcmp.eq.s32.totalorder %v773, 1
        %vm794 = vcmp.eq.s32.totalorder %v774, 1
        %vm795 = vcmp.eq.s32.totalorder %v775, 1
        %vm796 = vcmp.eq.s32.totalorder %v776, 1
        %vm797 = vcmp.eq.s32.totalorder %v777, 1
        %vm798 = vcmp.eq.s32.totalorder %v778, 1
        %vm799 = vcmp.eq.s32.totalorder %v779, 1
        %vm800 = vcmp.eq.s32.totalorder %v780, 1
        %vm801 = vcmp.eq.s32.totalorder %v781, 1
        %vm802 = vcmp.eq.s32.totalorder %v782, 1
        %vm803 = vcmp.eq.s32.totalorder %v783, 1
        %vm804 = vcmp.eq.s32.totalorder %v784, 1
        %vm805 = vcmp.eq.s32.totalorder %v785, 1
        %vm806 = vcmp.eq.s32.totalorder %v786, 1
        %vm807 = vcmp.eq.s32.totalorder %v787, 1
        %vm808 = vcmp.eq.s32.totalorder %v788, 1
        %vm809 = vcmp.eq.s32.totalorder %v789, 1
        %vm810 = vcmp.eq.s32.totalorder %v790, 1
        %v811 = vsel %vm791, 0.0, %v621
        %v812 = vsel %vm792, 0.0, %v622
        %v813 = vsel %vm793, 0.0, %v623
        %v814 = vsel %vm794, 0.0, %v624
        %v815 = vsel %vm795, 0.0, %v625
        %v816 = vsel %vm796, 0.0, %v626
        %v817 = vsel %vm797, 0.0, %v627
        %v818 = vsel %vm798, 0.0, %v628
        %v819 = vsel %vm799, 0.0, %v629
        %v820 = vsel %vm800, 0.0, %v630
        %v821 = vsel %vm801, 0.0, %v631
        %v822 = vsel %vm802, 0.0, %v632
        %v823 = vsel %vm803, 0.0, %v633
        %v824 = vsel %vm804, 0.0, %v634
        %v825 = vsel %vm805, 0.0, %v635
        %v826 = vsel %vm806, 0.0, %v636
        %v827 = vsel %vm807, 0.0, %v637
        %v828 = vsel %vm808, 0.0, %v638
        %v829 = vsel %vm809, 0.0, %v639
        %v830 = vsel %vm810, 0.0, %v640
        %vm831 = vcmp.lt.s32.totalorder %v642, 0
        %v832 = vsub.s32 0, %v642
        %v833 = vsel %vm831, %v832, %v642
        %v834 = vshrl.u32 %v833, 4
        %v835 = vand.u32 %v833, 15
        %v836 = vsub.s32 0, %v835
        %v837 = vsel %vm831, %v836, %v835
        %vm838 = vcmp.lt.s32.totalorder %v643, 0
        %v839 = vsub.s32 0, %v643
        %v840 = vsel %vm838, %v839, %v643
        %v841 = vshrl.u32 %v840, 4
        %v842 = vand.u32 %v840, 15
        %v843 = vsub.s32 0, %v842
        %v844 = vsel %vm838, %v843, %v842
        %vm845 = vcmp.lt.s32.totalorder %v644, 0
        %v846 = vsub.s32 0, %v644
        %v847 = vsel %vm845, %v846, %v644
        %v848 = vshrl.u32 %v847, 4
        %v849 = vand.u32 %v847, 15
        %v850 = vsub.s32 0, %v849
        %v851 = vsel %vm845, %v850, %v849
        %vm852 = vcmp.lt.s32.totalorder %v645, 0
        %v853 = vsub.s32 0, %v645
        %v854 = vsel %vm852, %v853, %v645
        %v855 = vshrl.u32 %v854, 4
        %v856 = vand.u32 %v854, 15
        %v857 = vsub.s32 0, %v856
        %v858 = vsel %vm852, %v857, %v856
        %vm859 = vcmp.lt.s32.totalorder %v646, 0
        %v860 = vsub.s32 0, %v646
        %v861 = vsel %vm859, %v860, %v646
        %v862 = vshrl.u32 %v861, 4
        %v863 = vand.u32 %v861, 15
        %v864 = vsub.s32 0, %v863
        %v865 = vsel %vm859, %v864, %v863
        %vm866 = vcmp.lt.s32.totalorder %v647, 0
        %v867 = vsub.s32 0, %v647
        %v868 = vsel %vm866, %v867, %v647
        %v869 = vshrl.u32 %v868, 4
        %v870 = vand.u32 %v868, 15
        %v871 = vsub.s32 0, %v870
        %v872 = vsel %vm866, %v871, %v870
        %vm873 = vcmp.lt.s32.totalorder %v648, 0
        %v874 = vsub.s32 0, %v648
        %v875 = vsel %vm873, %v874, %v648
        %v876 = vshrl.u32 %v875, 4
        %v877 = vand.u32 %v875, 15
        %v878 = vsub.s32 0, %v877
        %v879 = vsel %vm873, %v878, %v877
        %vm880 = vcmp.lt.s32.totalorder %v649, 0
        %v881 = vsub.s32 0, %v649
        %v882 = vsel %vm880, %v881, %v649
        %v883 = vshrl.u32 %v882, 4
        %v884 = vand.u32 %v882, 15
        %v885 = vsub.s32 0, %v884
        %v886 = vsel %vm880, %v885, %v884
        %vm887 = vcmp.lt.s32.totalorder %v650, 0
        %v888 = vsub.s32 0, %v650
        %v889 = vsel %vm887, %v888, %v650
        %v890 = vshrl.u32 %v889, 4
        %v891 = vand.u32 %v889, 15
        %v892 = vsub.s32 0, %v891
        %v893 = vsel %vm887, %v892, %v891
        %vm894 = vcmp.lt.s32.totalorder %v651, 0
        %v895 = vsub.s32 0, %v651
        %v896 = vsel %vm894, %v895, %v651
        %v897 = vshrl.u32 %v896, 4
        %v898 = vand.u32 %v896, 15
        %v899 = vsub.s32 0, %v898
        %v900 = vsel %vm894, %v899, %v898
        %vm901 = vcmp.lt.s32.totalorder %v652, 0
        %v902 = vsub.s32 0, %v652
        %v903 = vsel %vm901, %v902, %v652
        %v904 = vshrl.u32 %v903, 4
        %v905 = vand.u32 %v903, 15
        %v906 = vsub.s32 0, %v905
        %v907 = vsel %vm901, %v906, %v905
        %vm908 = vcmp.lt.s32.totalorder %v653, 0
        %v909 = vsub.s32 0, %v653
        %v910 = vsel %vm908, %v909, %v653
        %v911 = vshrl.u32 %v910, 4
        %v912 = vand.u32 %v910, 15
        %v913 = vsub.s32 0, %v912
        %v914 = vsel %vm908, %v913, %v912
        %vm915 = vcmp.lt.s32.totalorder %v654, 0
        %v916 = vsub.s32 0, %v654
        %v917 = vsel %vm915, %v916, %v654
        %v918 = vshrl.u32 %v917, 4
        %v919 = vand.u32 %v917, 15
        %v920 = vsub.s32 0, %v919
        %v921 = vsel %vm915, %v920, %v919
        %vm922 = vcmp.lt.s32.totalorder %v655, 0
        %v923 = vsub.s32 0, %v655
        %v924 = vsel %vm922, %v923, %v655
        %v925 = vshrl.u32 %v924, 4
        %v926 = vand.u32 %v924, 15
        %v927 = vsub.s32 0, %v926
        %v928 = vsel %vm922, %v927, %v926
        %vm929 = vcmp.lt.s32.totalorder %v656, 0
        %v930 = vsub.s32 0, %v656
        %v931 = vsel %vm929, %v930, %v656
        %v932 = vshrl.u32 %v931, 4
        %v933 = vand.u32 %v931, 15
        %v934 = vsub.s32 0, %v933
        %v935 = vsel %vm929, %v934, %v933
        %vm936 = vcmp.lt.s32.totalorder %v657, 0
        %v937 = vsub.s32 0, %v657
        %v938 = vsel %vm936, %v937, %v657
        %v939 = vshrl.u32 %v938, 4
        %v940 = vand.u32 %v938, 15
        %v941 = vsub.s32 0, %v940
        %v942 = vsel %vm936, %v941, %v940
        %vm943 = vcmp.lt.s32.totalorder %v658, 0
        %v944 = vsub.s32 0, %v658
        %v945 = vsel %vm943, %v944, %v658
        %v946 = vshrl.u32 %v945, 4
        %v947 = vand.u32 %v945, 15
        %v948 = vsub.s32 0, %v947
        %v949 = vsel %vm943, %v948, %v947
        %vm950 = vcmp.lt.s32.totalorder %v659, 0
        %v951 = vsub.s32 0, %v659
        %v952 = vsel %vm950, %v951, %v659
        %v953 = vshrl.u32 %v952, 4
        %v954 = vand.u32 %v952, 15
        %v955 = vsub.s32 0, %v954
        %v956 = vsel %vm950, %v955, %v954
        %vm957 = vcmp.lt.s32.totalorder %v660, 0
        %v958 = vsub.s32 0, %v660
        %v959 = vsel %vm957, %v958, %v660
        %v960 = vshrl.u32 %v959, 4
        %v961 = vand.u32 %v959, 15
        %v962 = vsub.s32 0, %v961
        %v963 = vsel %vm957, %v962, %v961
        %vm964 = vcmp.lt.s32.totalorder %v661, 0
        %v965 = vsub.s32 0, %v661
        %v966 = vsel %vm964, %v965, %v661
        %v967 = vshrl.u32 %v966, 4
        %v968 = vand.u32 %v966, 15
        %v969 = vsub.s32 0, %v968
        %v970 = vsel %vm964, %v969, %v968
        %vm971 = vcmp.ne.s32.totalorder %v837, 0
        %vm972 = vcmp.ne.s32.totalorder %v844, 0
        %vm973 = vcmp.ne.s32.totalorder %v851, 0
        %vm974 = vcmp.ne.s32.totalorder %v858, 0
        %vm975 = vcmp.ne.s32.totalorder %v865, 0
        %vm976 = vcmp.ne.s32.totalorder %v872, 0
        %vm977 = vcmp.ne.s32.totalorder %v879, 0
        %vm978 = vcmp.ne.s32.totalorder %v886, 0
        %vm979 = vcmp.ne.s32.totalorder %v893, 0
        %vm980 = vcmp.ne.s32.totalorder %v900, 0
        %vm981 = vcmp.ne.s32.totalorder %v907, 0
        %vm982 = vcmp.ne.s32.totalorder %v914, 0
        %vm983 = vcmp.ne.s32.totalorder %v921, 0
        %vm984 = vcmp.ne.s32.totalorder %v928, 0
        %vm985 = vcmp.ne.s32.totalorder %v935, 0
        %vm986 = vcmp.ne.s32.totalorder %v942, 0
        %vm987 = vcmp.ne.s32.totalorder %v949, 0
        %vm988 = vcmp.ne.s32.totalorder %v956, 0
        %vm989 = vcmp.ne.s32.totalorder %v963, 0
        %vm990 = vcmp.ne.s32.totalorder %v970, 0
        %vm991 = vcmp.lt.s32.totalorder %v837, 0
        %vm992 = vcmp.lt.s32.totalorder %v844, 0
        %vm993 = vcmp.lt.s32.totalorder %v851, 0
        %vm994 = vcmp.lt.s32.totalorder %v858, 0
        %vm995 = vcmp.lt.s32.totalorder %v865, 0
        %vm996 = vcmp.lt.s32.totalorder %v872, 0
        %vm997 = vcmp.lt.s32.totalorder %v879, 0
        %vm998 = vcmp.lt.s32.totalorder %v886, 0
        %vm999 = vcmp.lt.s32.totalorder %v893, 0
        %vm1000 = vcmp.lt.s32.totalorder %v900, 0
        %vm1001 = vcmp.lt.s32.totalorder %v907, 0
        %vm1002 = vcmp.lt.s32.totalorder %v914, 0
        %vm1003 = vcmp.lt.s32.totalorder %v921, 0
        %vm1004 = vcmp.lt.s32.totalorder %v928, 0
        %vm1005 = vcmp.lt.s32.totalorder %v935, 0
        %vm1006 = vcmp.lt.s32.totalorder %v942, 0
        %vm1007 = vcmp.lt.s32.totalorder %v949, 0
        %vm1008 = vcmp.lt.s32.totalorder %v956, 0
        %vm1009 = vcmp.lt.s32.totalorder %v963, 0
        %vm1010 = vcmp.lt.s32.totalorder %v970, 0
        %vm1011 = vmand %vm991, %vm971
        %vm1012 = vmand %vm992, %vm972
        %vm1013 = vmand %vm993, %vm973
        %vm1014 = vmand %vm994, %vm974
        %vm1015 = vmand %vm995, %vm975
        %vm1016 = vmand %vm996, %vm976
        %vm1017 = vmand %vm997, %vm977
        %vm1018 = vmand %vm998, %vm978
        %vm1019 = vmand %vm999, %vm979
        %vm1020 = vmand %vm1000, %vm980
        %vm1021 = vmand %vm1001, %vm981
        %vm1022 = vmand %vm1002, %vm982
        %vm1023 = vmand %vm1003, %vm983
        %vm1024 = vmand %vm1004, %vm984
        %vm1025 = vmand %vm1005, %vm985
        %vm1026 = vmand %vm1006, %vm986
        %vm1027 = vmand %vm1007, %vm987
        %vm1028 = vmand %vm1008, %vm988
        %vm1029 = vmand %vm1009, %vm989
        %vm1030 = vmand %vm1010, %vm990
        %v1031 = vadd.s32 %v837, 16
        %v1032 = vadd.s32 %v844, 16
        %v1033 = vadd.s32 %v851, 16
        %v1034 = vadd.s32 %v858, 16
        %v1035 = vadd.s32 %v865, 16
        %v1036 = vadd.s32 %v872, 16
        %v1037 = vadd.s32 %v879, 16
        %v1038 = vadd.s32 %v886, 16
        %v1039 = vadd.s32 %v893, 16
        %v1040 = vadd.s32 %v900, 16
        %v1041 = vadd.s32 %v907, 16
        %v1042 = vadd.s32 %v914, 16
        %v1043 = vadd.s32 %v921, 16
        %v1044 = vadd.s32 %v928, 16
        %v1045 = vadd.s32 %v935, 16
        %v1046 = vadd.s32 %v942, 16
        %v1047 = vadd.s32 %v949, 16
        %v1048 = vadd.s32 %v956, 16
        %v1049 = vadd.s32 %v963, 16
        %v1050 = vadd.s32 %v970, 16
        %v1051 = vsel %vm1011, %v1031, %v837
        %v1052 = vsel %vm1012, %v1032, %v844
        %v1053 = vsel %vm1013, %v1033, %v851
        %v1054 = vsel %vm1014, %v1034, %v858
        %v1055 = vsel %vm1015, %v1035, %v865
        %v1056 = vsel %vm1016, %v1036, %v872
        %v1057 = vsel %vm1017, %v1037, %v879
        %v1058 = vsel %vm1018, %v1038, %v886
        %v1059 = vsel %vm1019, %v1039, %v893
        %v1060 = vsel %vm1020, %v1040, %v900
        %v1061 = vsel %vm1021, %v1041, %v907
        %v1062 = vsel %vm1022, %v1042, %v914
        %v1063 = vsel %vm1023, %v1043, %v921
        %v1064 = vsel %vm1024, %v1044, %v928
        %v1065 = vsel %vm1025, %v1045, %v935
        %v1066 = vsel %vm1026, %v1046, %v942
        %v1067 = vsel %vm1027, %v1047, %v949
        %v1068 = vsel %vm1028, %v1048, %v956
        %v1069 = vsel %vm1029, %v1049, %v963
        %v1070 = vsel %vm1030, %v1050, %v970
        %v1071 = vpack.c.bf16 %v811, %v811
        %v1072 = vpack.c.bf16 %v812, %v812
        %v1073 = vpack.c.bf16 %v813, %v813
        %v1074 = vpack.c.bf16 %v814, %v814
        %v1075 = vpack.c.bf16 %v815, %v815
        %v1076 = vpack.c.bf16 %v816, %v816
        %v1077 = vpack.c.bf16 %v817, %v817
        %v1078 = vpack.c.bf16 %v818, %v818
        %v1079 = vpack.c.bf16 %v819, %v819
        %v1080 = vpack.c.bf16 %v820, %v820
        %v1081 = vpack.c.bf16 %v821, %v821
        %v1082 = vpack.c.bf16 %v822, %v822
        %v1083 = vpack.c.bf16 %v823, %v823
        %v1084 = vpack.c.bf16 %v824, %v824
        %v1085 = vpack.c.bf16 %v825, %v825
        %v1086 = vpack.c.bf16 %v826, %v826
        %v1087 = vpack.c.bf16 %v827, %v827
        %v1088 = vpack.c.bf16 %v828, %v828
        %v1089 = vpack.c.bf16 %v829, %v829
        %v1090 = vpack.c.bf16 %v830, %v830
        %vm1091 = vcmp.gt.s32.totalorder %v1051, 0
        %vm1092 = vcmp.gt.s32.totalorder %v1052, 0
        %vm1093 = vcmp.gt.s32.totalorder %v1053, 0
        %vm1094 = vcmp.gt.s32.totalorder %v1054, 0
        %vm1095 = vcmp.gt.s32.totalorder %v1055, 0
        %vm1096 = vcmp.gt.s32.totalorder %v1056, 0
        %vm1097 = vcmp.gt.s32.totalorder %v1057, 0
        %vm1098 = vcmp.gt.s32.totalorder %v1058, 0
        %vm1099 = vcmp.gt.s32.totalorder %v1059, 0
        %vm1100 = vcmp.gt.s32.totalorder %v1060, 0
        %vm1101 = vcmp.gt.s32.totalorder %v1061, 0
        %vm1102 = vcmp.gt.s32.totalorder %v1062, 0
        %vm1103 = vcmp.gt.s32.totalorder %v1063, 0
        %vm1104 = vcmp.gt.s32.totalorder %v1064, 0
        %vm1105 = vcmp.gt.s32.totalorder %v1065, 0
        %vm1106 = vcmp.gt.s32.totalorder %v1066, 0
        %vm1107 = vcmp.gt.s32.totalorder %v1067, 0
        %vm1108 = vcmp.gt.s32.totalorder %v1068, 0
        %vm1109 = vcmp.gt.s32.totalorder %v1069, 0
        %vm1110 = vcmp.gt.s32.totalorder %v1070, 0
        %v1111 = vrot.slane %v811, 7
        %v1112 = vrot.slane %v812, 7
        %v1113 = vrot.slane %v813, 7
        %v1114 = vrot.slane %v814, 7
        %v1115 = vrot.slane %v815, 7
        %v1116 = vrot.slane %v816, 7
        %v1117 = vrot.slane %v817, 7
        %v1118 = vrot.slane %v818, 7
        %v1119 = vrot.slane %v819, 7
        %v1120 = vrot.slane %v820, 7
        %v1121 = vrot.slane %v821, 7
        %v1122 = vrot.slane %v822, 7
        %v1123 = vrot.slane %v823, 7
        %v1124 = vrot.slane %v824, 7
        %v1125 = vrot.slane %v825, 7
        %v1126 = vrot.slane %v826, 7
        %v1127 = vrot.slane %v827, 7
        %v1128 = vrot.slane %v828, 7
        %v1129 = vrot.slane %v829, 7
        %v1130 = vrot.slane %v830, 7
        %vm1131 = vcmp.lt.s32.totalorder %v642, 1
        %v1132 = vsel %vm1131, %v1129, %v1130
        %v1133 = vsel %vm1131, %v1128, %v1129
        %v1134 = vsel %vm1131, %v1127, %v1128
        %v1135 = vsel %vm1131, %v1126, %v1127
        %v1136 = vsel %vm1131, %v1125, %v1126
        %v1137 = vsel %vm1131, %v1124, %v1125
        %v1138 = vsel %vm1131, %v1123, %v1124
        %v1139 = vsel %vm1131, %v1122, %v1123
        %v1140 = vsel %vm1131, %v1121, %v1122
        %v1141 = vsel %vm1131, %v1120, %v1121
        %v1142 = vsel %vm1131, %v1119, %v1120
        %v1143 = vsel %vm1131, %v1118, %v1119
        %v1144 = vsel %vm1131, %v1117, %v1118
        %v1145 = vsel %vm1131, %v1116, %v1117
        %v1146 = vsel %vm1131, %v1115, %v1116
        %v1147 = vsel %vm1131, %v1114, %v1115
        %v1148 = vsel %vm1131, %v1113, %v1114
        %v1149 = vsel %vm1131, %v1112, %v1113
        %v1150 = vsel %vm1131, %v1111, %v1112
        %v1151 = vsel %vm1131, %v1130, %v1111
        %v1152 = vsel %vm1091, 1, 0
        %v1153 = vsel %vm1092, 1, 0
        %v1154 = vsel %vm1093, 1, 0
        %v1155 = vsel %vm1094, 1, 0
        %v1156 = vsel %vm1095, 1, 0
        %v1157 = vsel %vm1096, 1, 0
        %v1158 = vsel %vm1097, 1, 0
        %v1159 = vsel %vm1098, 1, 0
        %v1160 = vsel %vm1099, 1, 0
        %v1161 = vsel %vm1100, 1, 0
        %v1162 = vsel %vm1101, 1, 0
        %v1163 = vsel %vm1102, 1, 0
        %v1164 = vsel %vm1103, 1, 0
        %v1165 = vsel %vm1104, 1, 0
        %v1166 = vsel %vm1105, 1, 0
        %v1167 = vsel %vm1106, 1, 0
        %v1168 = vsel %vm1107, 1, 0
        %v1169 = vsel %vm1108, 1, 0
        %v1170 = vsel %vm1109, 1, 0
        %v1171 = vsel %vm1110, 1, 0
        %vm1172 = vcmp.eq.s32.totalorder %v1152, 1
        %vm1173 = vcmp.eq.s32.totalorder %v1153, 1
        %vm1174 = vcmp.eq.s32.totalorder %v1154, 1
        %vm1175 = vcmp.eq.s32.totalorder %v1155, 1
        %vm1176 = vcmp.eq.s32.totalorder %v1156, 1
        %vm1177 = vcmp.eq.s32.totalorder %v1157, 1
        %vm1178 = vcmp.eq.s32.totalorder %v1158, 1
        %vm1179 = vcmp.eq.s32.totalorder %v1159, 1
        %vm1180 = vcmp.eq.s32.totalorder %v1160, 1
        %vm1181 = vcmp.eq.s32.totalorder %v1161, 1
        %vm1182 = vcmp.eq.s32.totalorder %v1162, 1
        %vm1183 = vcmp.eq.s32.totalorder %v1163, 1
        %vm1184 = vcmp.eq.s32.totalorder %v1164, 1
        %vm1185 = vcmp.eq.s32.totalorder %v1165, 1
        %vm1186 = vcmp.eq.s32.totalorder %v1166, 1
        %vm1187 = vcmp.eq.s32.totalorder %v1167, 1
        %vm1188 = vcmp.eq.s32.totalorder %v1168, 1
        %vm1189 = vcmp.eq.s32.totalorder %v1169, 1
        %vm1190 = vcmp.eq.s32.totalorder %v1170, 1
        %vm1191 = vcmp.eq.s32.totalorder %v1171, 1
        %v1192 = vsel %vm1172, %v1151, 0.0
        %v1193 = vsel %vm1173, %v1150, 0.0
        %v1194 = vsel %vm1174, %v1149, 0.0
        %v1195 = vsel %vm1175, %v1148, 0.0
        %v1196 = vsel %vm1176, %v1147, 0.0
        %v1197 = vsel %vm1177, %v1146, 0.0
        %v1198 = vsel %vm1178, %v1145, 0.0
        %v1199 = vsel %vm1179, %v1144, 0.0
        %v1200 = vsel %vm1180, %v1143, 0.0
        %v1201 = vsel %vm1181, %v1142, 0.0
        %v1202 = vsel %vm1182, %v1141, 0.0
        %v1203 = vsel %vm1183, %v1140, 0.0
        %v1204 = vsel %vm1184, %v1139, 0.0
        %v1205 = vsel %vm1185, %v1138, 0.0
        %v1206 = vsel %vm1186, %v1137, 0.0
        %v1207 = vsel %vm1187, %v1136, 0.0
        %v1208 = vsel %vm1188, %v1135, 0.0
        %v1209 = vsel %vm1189, %v1134, 0.0
        %v1210 = vsel %vm1190, %v1133, 0.0
        %v1211 = vsel %vm1191, %v1132, 0.0
        %v1212 = vpack.c.bf16 %v1192, %v1192
        %v1213 = vpack.c.bf16 %v1193, %v1193
        %v1214 = vpack.c.bf16 %v1194, %v1194
        %v1215 = vpack.c.bf16 %v1195, %v1195
        %v1216 = vpack.c.bf16 %v1196, %v1196
        %v1217 = vpack.c.bf16 %v1197, %v1197
        %v1218 = vpack.c.bf16 %v1198, %v1198
        %v1219 = vpack.c.bf16 %v1199, %v1199
        %v1220 = vpack.c.bf16 %v1200, %v1200
        %v1221 = vpack.c.bf16 %v1201, %v1201
        %v1222 = vpack.c.bf16 %v1202, %v1202
        %v1223 = vpack.c.bf16 %v1203, %v1203
        %v1224 = vpack.c.bf16 %v1204, %v1204
        %v1225 = vpack.c.bf16 %v1205, %v1205
        %v1226 = vpack.c.bf16 %v1206, %v1206
        %v1227 = vpack.c.bf16 %v1207, %v1207
        %v1228 = vpack.c.bf16 %v1208, %v1208
        %v1229 = vpack.c.bf16 %v1209, %v1209
        %v1230 = vpack.c.bf16 %v1210, %v1210
        %v1231 = vpack.c.bf16 %v1211, %v1211
        %vm1232 = vcmp.lt.s32.totalorder %v1051, 15
        %vm1233 = vcmp.lt.s32.totalorder %v1052, 15
        %vm1234 = vcmp.lt.s32.totalorder %v1053, 15
        %vm1235 = vcmp.lt.s32.totalorder %v1054, 15
        %vm1236 = vcmp.lt.s32.totalorder %v1055, 15
        %vm1237 = vcmp.lt.s32.totalorder %v1056, 15
        %vm1238 = vcmp.lt.s32.totalorder %v1057, 15
        %vm1239 = vcmp.lt.s32.totalorder %v1058, 15
        %vm1240 = vcmp.lt.s32.totalorder %v1059, 15
        %vm1241 = vcmp.lt.s32.totalorder %v1060, 15
        %vm1242 = vcmp.lt.s32.totalorder %v1061, 15
        %vm1243 = vcmp.lt.s32.totalorder %v1062, 15
        %vm1244 = vcmp.lt.s32.totalorder %v1063, 15
        %vm1245 = vcmp.lt.s32.totalorder %v1064, 15
        %vm1246 = vcmp.lt.s32.totalorder %v1065, 15
        %vm1247 = vcmp.lt.s32.totalorder %v1066, 15
        %vm1248 = vcmp.lt.s32.totalorder %v1067, 15
        %vm1249 = vcmp.lt.s32.totalorder %v1068, 15
        %vm1250 = vcmp.lt.s32.totalorder %v1069, 15
        %vm1251 = vcmp.lt.s32.totalorder %v1070, 15
        %v1252 = vrot.slane %v811, 1
        %v1253 = vrot.slane %v812, 1
        %v1254 = vrot.slane %v813, 1
        %v1255 = vrot.slane %v814, 1
        %v1256 = vrot.slane %v815, 1
        %v1257 = vrot.slane %v816, 1
        %v1258 = vrot.slane %v817, 1
        %v1259 = vrot.slane %v818, 1
        %v1260 = vrot.slane %v819, 1
        %v1261 = vrot.slane %v820, 1
        %v1262 = vrot.slane %v821, 1
        %v1263 = vrot.slane %v822, 1
        %v1264 = vrot.slane %v823, 1
        %v1265 = vrot.slane %v824, 1
        %v1266 = vrot.slane %v825, 1
        %v1267 = vrot.slane %v826, 1
        %v1268 = vrot.slane %v827, 1
        %v1269 = vrot.slane %v828, 1
        %v1270 = vrot.slane %v829, 1
        %v1271 = vrot.slane %v830, 1
        %vm1272 = vcmp.lt.s32.totalorder %v642, 7
        %v1273 = vsel %vm1272, %v1270, %v1271
        %v1274 = vsel %vm1272, %v1269, %v1270
        %v1275 = vsel %vm1272, %v1268, %v1269
        %v1276 = vsel %vm1272, %v1267, %v1268
        %v1277 = vsel %vm1272, %v1266, %v1267
        %v1278 = vsel %vm1272, %v1265, %v1266
        %v1279 = vsel %vm1272, %v1264, %v1265
        %v1280 = vsel %vm1272, %v1263, %v1264
        %v1281 = vsel %vm1272, %v1262, %v1263
        %v1282 = vsel %vm1272, %v1261, %v1262
        %v1283 = vsel %vm1272, %v1260, %v1261
        %v1284 = vsel %vm1272, %v1259, %v1260
        %v1285 = vsel %vm1272, %v1258, %v1259
        %v1286 = vsel %vm1272, %v1257, %v1258
        %v1287 = vsel %vm1272, %v1256, %v1257
        %v1288 = vsel %vm1272, %v1255, %v1256
        %v1289 = vsel %vm1272, %v1254, %v1255
        %v1290 = vsel %vm1272, %v1253, %v1254
        %v1291 = vsel %vm1272, %v1252, %v1253
        %v1292 = vsel %vm1272, %v1271, %v1252
        %v1293 = vsel %vm1232, 1, 0
        %v1294 = vsel %vm1233, 1, 0
        %v1295 = vsel %vm1234, 1, 0
        %v1296 = vsel %vm1235, 1, 0
        %v1297 = vsel %vm1236, 1, 0
        %v1298 = vsel %vm1237, 1, 0
        %v1299 = vsel %vm1238, 1, 0
        %v1300 = vsel %vm1239, 1, 0
        %v1301 = vsel %vm1240, 1, 0
        %v1302 = vsel %vm1241, 1, 0
        %v1303 = vsel %vm1242, 1, 0
        %v1304 = vsel %vm1243, 1, 0
        %v1305 = vsel %vm1244, 1, 0
        %v1306 = vsel %vm1245, 1, 0
        %v1307 = vsel %vm1246, 1, 0
        %v1308 = vsel %vm1247, 1, 0
        %v1309 = vsel %vm1248, 1, 0
        %v1310 = vsel %vm1249, 1, 0
        %v1311 = vsel %vm1250, 1, 0
        %v1312 = vsel %vm1251, 1, 0
        %vm1313 = vcmp.eq.s32.totalorder %v1293, 1
        %vm1314 = vcmp.eq.s32.totalorder %v1294, 1
        %vm1315 = vcmp.eq.s32.totalorder %v1295, 1
        %vm1316 = vcmp.eq.s32.totalorder %v1296, 1
        %vm1317 = vcmp.eq.s32.totalorder %v1297, 1
        %vm1318 = vcmp.eq.s32.totalorder %v1298, 1
        %vm1319 = vcmp.eq.s32.totalorder %v1299, 1
        %vm1320 = vcmp.eq.s32.totalorder %v1300, 1
        %vm1321 = vcmp.eq.s32.totalorder %v1301, 1
        %vm1322 = vcmp.eq.s32.totalorder %v1302, 1
        %vm1323 = vcmp.eq.s32.totalorder %v1303, 1
        %vm1324 = vcmp.eq.s32.totalorder %v1304, 1
        %vm1325 = vcmp.eq.s32.totalorder %v1305, 1
        %vm1326 = vcmp.eq.s32.totalorder %v1306, 1
        %vm1327 = vcmp.eq.s32.totalorder %v1307, 1
        %vm1328 = vcmp.eq.s32.totalorder %v1308, 1
        %vm1329 = vcmp.eq.s32.totalorder %v1309, 1
        %vm1330 = vcmp.eq.s32.totalorder %v1310, 1
        %vm1331 = vcmp.eq.s32.totalorder %v1311, 1
        %vm1332 = vcmp.eq.s32.totalorder %v1312, 1
        %v1333 = vsel %vm1313, %v1291, 0.0
        %v1334 = vsel %vm1314, %v1290, 0.0
        %v1335 = vsel %vm1315, %v1289, 0.0
        %v1336 = vsel %vm1316, %v1288, 0.0
        %v1337 = vsel %vm1317, %v1287, 0.0
        %v1338 = vsel %vm1318, %v1286, 0.0
        %v1339 = vsel %vm1319, %v1285, 0.0
        %v1340 = vsel %vm1320, %v1284, 0.0
        %v1341 = vsel %vm1321, %v1283, 0.0
        %v1342 = vsel %vm1322, %v1282, 0.0
        %v1343 = vsel %vm1323, %v1281, 0.0
        %v1344 = vsel %vm1324, %v1280, 0.0
        %v1345 = vsel %vm1325, %v1279, 0.0
        %v1346 = vsel %vm1326, %v1278, 0.0
        %v1347 = vsel %vm1327, %v1277, 0.0
        %v1348 = vsel %vm1328, %v1276, 0.0
        %v1349 = vsel %vm1329, %v1275, 0.0
        %v1350 = vsel %vm1330, %v1274, 0.0
        %v1351 = vsel %vm1331, %v1273, 0.0
        %v1352 = vsel %vm1332, %v1292, 0.0
        %v1353 = vpack.c.bf16 %v1333, %v1333
        %v1354 = vpack.c.bf16 %v1334, %v1334
        %v1355 = vpack.c.bf16 %v1335, %v1335
        %v1356 = vpack.c.bf16 %v1336, %v1336
        %v1357 = vpack.c.bf16 %v1337, %v1337
        %v1358 = vpack.c.bf16 %v1338, %v1338
        %v1359 = vpack.c.bf16 %v1339, %v1339
        %v1360 = vpack.c.bf16 %v1340, %v1340
        %v1361 = vpack.c.bf16 %v1341, %v1341
        %v1362 = vpack.c.bf16 %v1342, %v1342
        %v1363 = vpack.c.bf16 %v1343, %v1343
        %v1364 = vpack.c.bf16 %v1344, %v1344
        %v1365 = vpack.c.bf16 %v1345, %v1345
        %v1366 = vpack.c.bf16 %v1346, %v1346
        %v1367 = vpack.c.bf16 %v1347, %v1347
        %v1368 = vpack.c.bf16 %v1348, %v1348
        %v1369 = vpack.c.bf16 %v1349, %v1349
        %v1370 = vpack.c.bf16 %v1350, %v1350
        %v1371 = vpack.c.bf16 %v1351, %v1351
        %v1372 = vpack.c.bf16 %v1352, %v1352
        %v1393 = vunpack.c.l.b16 %v1212
        %v1394 = vunpack.c.l.b16 %v1213
        %v1395 = vunpack.c.l.b16 %v1214
        %v1396 = vunpack.c.l.b16 %v1215
        %v1397 = vunpack.c.l.b16 %v1216
        %v1398 = vunpack.c.l.b16 %v1217
        %v1399 = vunpack.c.l.b16 %v1218
        %v1400 = vunpack.c.l.b16 %v1219
        %v1401 = vunpack.c.l.b16 %v1220
        %v1402 = vunpack.c.l.b16 %v1221
        %v1403 = vunpack.c.l.b16 %v1222
        %v1404 = vunpack.c.l.b16 %v1223
        %v1405 = vunpack.c.l.b16 %v1224
        %v1406 = vunpack.c.l.b16 %v1225
        %v1407 = vunpack.c.l.b16 %v1226
        %v1408 = vunpack.c.l.b16 %v1227
        %v1409 = vunpack.c.l.b16 %v1228
        %v1410 = vunpack.c.l.b16 %v1229
        %v1411 = vunpack.c.l.b16 %v1230
        %v1412 = vunpack.c.l.b16 %v1231
        %v1413 = vpack.c.b16 %v1394, %v1393
        %v1414 = vpack.c.b16 %v1396, %v1395
        %v1415 = vpack.c.b16 %v1398, %v1397
        %v1416 = vpack.c.b16 %v1400, %v1399
        %v1417 = vpack.c.b16 %v1402, %v1401
        %v1418 = vpack.c.b16 %v1404, %v1403
        %v1419 = vpack.c.b16 %v1406, %v1405
        %v1420 = vpack.c.b16 %v1408, %v1407
        %v1421 = vpack.c.b16 %v1410, %v1409
        %v1422 = vpack.c.b16 %v1412, %v1411
        %v1453 = vunpack.c.l.b16 %v1071
        %v1454 = vunpack.c.l.b16 %v1072
        %v1455 = vunpack.c.l.b16 %v1073
        %v1456 = vunpack.c.l.b16 %v1074
        %v1457 = vunpack.c.l.b16 %v1075
        %v1458 = vunpack.c.l.b16 %v1076
        %v1459 = vunpack.c.l.b16 %v1077
        %v1460 = vunpack.c.l.b16 %v1078
        %v1461 = vunpack.c.l.b16 %v1079
        %v1462 = vunpack.c.l.b16 %v1080
        %v1463 = vunpack.c.l.b16 %v1081
        %v1464 = vunpack.c.l.b16 %v1082
        %v1465 = vunpack.c.l.b16 %v1083
        %v1466 = vunpack.c.l.b16 %v1084
        %v1467 = vunpack.c.l.b16 %v1085
        %v1468 = vunpack.c.l.b16 %v1086
        %v1469 = vunpack.c.l.b16 %v1087
        %v1470 = vunpack.c.l.b16 %v1088
        %v1471 = vunpack.c.l.b16 %v1089
        %v1472 = vunpack.c.l.b16 %v1090
        %v1473 = vpack.c.b16 %v1454, %v1453
        %v1474 = vpack.c.b16 %v1456, %v1455
        %v1475 = vpack.c.b16 %v1458, %v1457
        %v1476 = vpack.c.b16 %v1460, %v1459
        %v1477 = vpack.c.b16 %v1462, %v1461
        %v1478 = vpack.c.b16 %v1464, %v1463
        %v1479 = vpack.c.b16 %v1466, %v1465
        %v1480 = vpack.c.b16 %v1468, %v1467
        %v1481 = vpack.c.b16 %v1470, %v1469
        %v1482 = vpack.c.b16 %v1472, %v1471
        %v1513 = vunpack.c.l.b16 %v1353
        %v1514 = vunpack.c.l.b16 %v1354
        %v1515 = vunpack.c.l.b16 %v1355
        %v1516 = vunpack.c.l.b16 %v1356
        %v1517 = vunpack.c.l.b16 %v1357
        %v1518 = vunpack.c.l.b16 %v1358
        %v1519 = vunpack.c.l.b16 %v1359
        %v1520 = vunpack.c.l.b16 %v1360
        %v1521 = vunpack.c.l.b16 %v1361
        %v1522 = vunpack.c.l.b16 %v1362
        %v1523 = vunpack.c.l.b16 %v1363
        %v1524 = vunpack.c.l.b16 %v1364
        %v1525 = vunpack.c.l.b16 %v1365
        %v1526 = vunpack.c.l.b16 %v1366
        %v1527 = vunpack.c.l.b16 %v1367
        %v1528 = vunpack.c.l.b16 %v1368
        %v1529 = vunpack.c.l.b16 %v1369
        %v1530 = vunpack.c.l.b16 %v1370
        %v1531 = vunpack.c.l.b16 %v1371
        %v1532 = vunpack.c.l.b16 %v1372
        %v1533 = vpack.c.b16 %v1514, %v1513
        %v1534 = vpack.c.b16 %v1516, %v1515
        %v1535 = vpack.c.b16 %v1518, %v1517
        %v1536 = vpack.c.b16 %v1520, %v1519
        %v1537 = vpack.c.b16 %v1522, %v1521
        %v1538 = vpack.c.b16 %v1524, %v1523
        %v1539 = vpack.c.b16 %v1526, %v1525
        %v1540 = vpack.c.b16 %v1528, %v1527
        %v1541 = vpack.c.b16 %v1530, %v1529
        %v1542 = vpack.c.b16 %v1532, %v1531
        %v1553 = vld [vmem:[#allocation2] sm:$0xf]
        %v1554 = vld [vmem:[#allocation2 + $0x4] sm:$0xf]
        %v1555 = vld [vmem:[#allocation2 + $0x8] sm:$0xf]
        %v1556 = vld [vmem:[#allocation2 + $0xc] sm:$0xf]
        %v1557 = vld [vmem:[#allocation2 + $0x10] sm:$0xf]
        %v1558 = vld [vmem:[#allocation2 + $0x14] sm:$0xf]
        %v1559 = vld [vmem:[#allocation2 + $0x18] sm:$0xf]
        %v1560 = vld [vmem:[#allocation2 + $0x1c] sm:$0xf]
        %v1561 = vld [vmem:[#allocation2 + $0x20] sm:$0xf]
        %v1562 = vld [vmem:[#allocation2 + $0x24] sm:$0xf]
        %v1563 = vld [vmem:[#allocation2 + $0x28] sm:$0xf]
        %v1564 = vld [vmem:[#allocation2 + $0x2c] sm:$0xf]
        %v1565 = vld [vmem:[#allocation2 + $0x30] sm:$0xf]
        %v1566 = vld [vmem:[#allocation2 + $0x34] sm:$0xf]
        %v1567 = vld [vmem:[#allocation2 + $0x38] sm:$0xf]
        %v1568 = vld [vmem:[#allocation2 + $0x3c] sm:$0xf]
        %v1569 = vld [vmem:[#allocation2 + $0x40] sm:$0xf]
        %v1570 = vld [vmem:[#allocation2 + $0x44] sm:$0xf]
        %v1571 = vld [vmem:[#allocation2 + $0x48] sm:$0xf]
        %v1572 = vld [vmem:[#allocation2 + $0x4c] sm:$0xf]
        %v1573 = vld [vmem:[#allocation2 + $0x50] sm:$0xf]
        %v1574 = vld [vmem:[#allocation2 + $0x54] sm:$0xf]
        %v1575 = vld [vmem:[#allocation2 + $0x58] sm:$0xf]
        %v1576 = vld [vmem:[#allocation2 + $0x5c] sm:$0xf]
        %v1577 = vld [vmem:[#allocation2 + $0x60] sm:$0xf]
        %v1578 = vld [vmem:[#allocation2 + $0x64] sm:$0xf]
        %v1579 = vld [vmem:[#allocation2 + $0x68] sm:$0xf]
        %v1580 = vld [vmem:[#allocation2 + $0x6c] sm:$0xf]
        %v1581 = vld [vmem:[#allocation2 + $0x70] sm:$0xf]
        %v1582 = vld [vmem:[#allocation2 + $0x74] sm:$0xf]
        %v1583 = vld [vmem:[#allocation2 + $0x78] sm:$0xf]
        %v1584 = vld [vmem:[#allocation2 + $0x7c] sm:$0xf]
        %v1585 = vld [vmem:[#allocation2 + $0x80] sm:$0xf]
        %v1586 = vld [vmem:[#allocation2 + $0x84] sm:$0xf]
        %v1587 = vld [vmem:[#allocation2 + $0x88] sm:$0xf]
        %v1588 = vld [vmem:[#allocation2 + $0x8c] sm:$0xf]
        %v1589 = vld [vmem:[#allocation2 + $0x90] sm:$0xf]
        %v1590 = vld [vmem:[#allocation2 + $0x94] sm:$0xf]
        %v1591 = vld [vmem:[#allocation2 + $0x98] sm:$0xf]
        %v1592 = vld [vmem:[#allocation2 + $0x9c] sm:$0xf]
        %v1593 = vld [vmem:[#allocation2 + $0xa0] sm:$0xf]
        %v1594 = vld [vmem:[#allocation2 + $0xa4] sm:$0xf]
        %v1595 = vld [vmem:[#allocation2 + $0xa8] sm:$0xf]
        %v1596 = vld [vmem:[#allocation2 + $0xac] sm:$0xf]
        %v1597 = vld [vmem:[#allocation2 + $0xb0] sm:$0xf]
        %v1598 = vld [vmem:[#allocation2 + $0xb4] sm:$0xf]
        %v1599 = vld [vmem:[#allocation2 + $0xb8] sm:$0xf]
        %v1600 = vld [vmem:[#allocation2 + $0xbc] sm:$0xf]
        %s1601 = scalar_lea.vmem [#allocation2], 192
        %v1602 = vld [vmem:[%s1601] sm:$0xf]
        %v1603 = vld [vmem:[%s1601 + $0x4] sm:$0xf]
        %v1604 = vld [vmem:[%s1601 + $0x8] sm:$0xf]
        %v1605 = vld [vmem:[%s1601 + $0xc] sm:$0xf]
        %v1606 = vld [vmem:[%s1601 + $0x10] sm:$0xf]
        %v1607 = vld [vmem:[%s1601 + $0x14] sm:$0xf]
        %v1608 = vld [vmem:[%s1601 + $0x18] sm:$0xf]
        %v1609 = vld [vmem:[%s1601 + $0x1c] sm:$0xf]
        %v1610 = vld [vmem:[%s1601 + $0x20] sm:$0xf]
        %v1611 = vld [vmem:[%s1601 + $0x24] sm:$0xf]
        %v1612 = vld [vmem:[%s1601 + $0x28] sm:$0xf]
        %v1613 = vld [vmem:[%s1601 + $0x2c] sm:$0xf]
        %v1614 = vld [vmem:[%s1601 + $0x30] sm:$0xf]
        %v1615 = vld [vmem:[%s1601 + $0x34] sm:$0xf]
        %v1616 = vld [vmem:[%s1601 + $0x38] sm:$0xf]
        %v1617 = vld [vmem:[%s1601 + $0x3c] sm:$0xf]
        %v1618 = vld [vmem:[%s1601 + $0x40] sm:$0xf]
        %v1619 = vld [vmem:[%s1601 + $0x44] sm:$0xf]
        %v1620 = vld [vmem:[%s1601 + $0x48] sm:$0xf]
        %v1621 = vld [vmem:[%s1601 + $0x4c] sm:$0xf]
        %v1622 = vld [vmem:[%s1601 + $0x50] sm:$0xf]
        %v1623 = vld [vmem:[%s1601 + $0x54] sm:$0xf]
        %v1624 = vld [vmem:[%s1601 + $0x58] sm:$0xf]
        %v1625 = vld [vmem:[%s1601 + $0x5c] sm:$0xf]
        %v1626 = vld [vmem:[%s1601 + $0x60] sm:$0xf]
        %v1627 = vld [vmem:[%s1601 + $0x64] sm:$0xf]
        %v1628 = vld [vmem:[%s1601 + $0x68] sm:$0xf]
        %v1629 = vld [vmem:[%s1601 + $0x6c] sm:$0xf]
        %v1630 = vld [vmem:[%s1601 + $0x70] sm:$0xf]
        %v1631 = vld [vmem:[%s1601 + $0x74] sm:$0xf]
        %v1632 = vld [vmem:[%s1601 + $0x78] sm:$0xf]
        %v1633 = vld [vmem:[%s1601 + $0x7c] sm:$0xf]
        %v1634 = vld [vmem:[%s1601 + $0x80] sm:$0xf]
        %v1635 = vld [vmem:[%s1601 + $0x84] sm:$0xf]
        %v1636 = vld [vmem:[%s1601 + $0x88] sm:$0xf]
        %v1637 = vld [vmem:[%s1601 + $0x8c] sm:$0xf]
        %v1638 = vld [vmem:[%s1601 + $0x90] sm:$0xf]
        %v1639 = vld [vmem:[%s1601 + $0x94] sm:$0xf]
        %v1640 = vld [vmem:[%s1601 + $0x98] sm:$0xf]
        %v1641 = vld [vmem:[%s1601 + $0x9c] sm:$0xf]
        %v1642 = vld [vmem:[%s1601 + $0xa0] sm:$0xf]
        %v1643 = vld [vmem:[%s1601 + $0xa4] sm:$0xf]
        %v1644 = vld [vmem:[%s1601 + $0xa8] sm:$0xf]
        %v1645 = vld [vmem:[%s1601 + $0xac] sm:$0xf]
        %v1646 = vld [vmem:[%s1601 + $0xb0] sm:$0xf]
        %v1647 = vld [vmem:[%s1601 + $0xb4] sm:$0xf]
        %v1648 = vld [vmem:[%s1601 + $0xb8] sm:$0xf]
        %v1649 = vld [vmem:[%s1601 + $0xbc] sm:$0xf]
        %v1698 = vunpack.c.l.b16 %v1602
        %v1699 = vunpack.c.l.b16 %v1603
        %v1700 = vunpack.c.l.b16 %v1604
        %v1701 = vunpack.c.l.b16 %v1605
        %v1702 = vunpack.c.l.b16 %v1606
        %v1703 = vunpack.c.l.b16 %v1607
        %v1704 = vunpack.c.l.b16 %v1608
        %v1705 = vunpack.c.l.b16 %v1609
        %v1706 = vunpack.c.l.b16 %v1610
        %v1707 = vunpack.c.l.b16 %v1611
        %v1708 = vunpack.c.l.b16 %v1612
        %v1709 = vunpack.c.l.b16 %v1613
        %v1710 = vunpack.c.l.b16 %v1614
        %v1711 = vunpack.c.l.b16 %v1615
        %v1712 = vunpack.c.l.b16 %v1616
        %v1713 = vunpack.c.l.b16 %v1617
        %v1714 = vunpack.c.l.b16 %v1618
        %v1715 = vunpack.c.l.b16 %v1619
        %v1716 = vunpack.c.l.b16 %v1620
        %v1717 = vunpack.c.l.b16 %v1621
        %v1718 = vunpack.c.l.b16 %v1622
        %v1719 = vunpack.c.l.b16 %v1623
        %v1720 = vunpack.c.l.b16 %v1624
        %v1721 = vunpack.c.l.b16 %v1625
        %v1722 = vunpack.c.l.b16 %v1626
        %v1723 = vunpack.c.l.b16 %v1627
        %v1724 = vunpack.c.l.b16 %v1628
        %v1725 = vunpack.c.l.b16 %v1629
        %v1726 = vunpack.c.l.b16 %v1630
        %v1727 = vunpack.c.l.b16 %v1631
        %v1728 = vunpack.c.l.b16 %v1632
        %v1729 = vunpack.c.l.b16 %v1633
        %v1730 = vunpack.c.l.b16 %v1634
        %v1731 = vunpack.c.l.b16 %v1635
        %v1732 = vunpack.c.l.b16 %v1636
        %v1733 = vunpack.c.l.b16 %v1637
        %v1734 = vunpack.c.l.b16 %v1638
        %v1735 = vunpack.c.l.b16 %v1639
        %v1736 = vunpack.c.l.b16 %v1640
        %v1737 = vunpack.c.l.b16 %v1641
        %v1738 = vunpack.c.l.b16 %v1642
        %v1739 = vunpack.c.l.b16 %v1643
        %v1740 = vunpack.c.l.b16 %v1644
        %v1741 = vunpack.c.l.b16 %v1645
        %v1742 = vunpack.c.l.b16 %v1646
        %v1743 = vunpack.c.l.b16 %v1647
        %v1744 = vunpack.c.l.b16 %v1648
        %v1745 = vunpack.c.l.b16 %v1649
        %v1746 = vpack.c.b16 %v1699, %v1698
        %v1747 = vpack.c.b16 %v1701, %v1700
        %v1748 = vpack.c.b16 %v1703, %v1702
        %v1749 = vpack.c.b16 %v1705, %v1704
        %v1750 = vpack.c.b16 %v1707, %v1706
        %v1751 = vpack.c.b16 %v1709, %v1708
        %v1752 = vpack.c.b16 %v1711, %v1710
        %v1753 = vpack.c.b16 %v1713, %v1712
        %v1754 = vpack.c.b16 %v1715, %v1714
        %v1755 = vpack.c.b16 %v1717, %v1716
        %v1756 = vpack.c.b16 %v1719, %v1718
        %v1757 = vpack.c.b16 %v1721, %v1720
        %v1758 = vpack.c.b16 %v1723, %v1722
        %v1759 = vpack.c.b16 %v1725, %v1724
        %v1760 = vpack.c.b16 %v1727, %v1726
        %v1761 = vpack.c.b16 %v1729, %v1728
        %v1762 = vpack.c.b16 %v1731, %v1730
        %v1763 = vpack.c.b16 %v1733, %v1732
        %v1764 = vpack.c.b16 %v1735, %v1734
        %v1765 = vpack.c.b16 %v1737, %v1736
        %v1766 = vpack.c.b16 %v1739, %v1738
        %v1767 = vpack.c.b16 %v1741, %v1740
        %v1768 = vpack.c.b16 %v1743, %v1742
        %v1769 = vpack.c.b16 %v1745, %v1744
        %1794 = vmatpush.bf16.msra.mxu0 %v1753
        %1795 = vmatpush.bf16.msra.mxu0 %v1752
        %1796 = vmatpush.bf16.msra.mxu0 %v1751
        %1797 = vmatpush.bf16.msra.mxu0 %v1750
        %1798 = vmatpush.bf16.msra.mxu0 %v1749
        %1799 = vmatpush.bf16.msra.mxu0 %v1748
        %1800 = vmatpush.bf16.msra.mxu0 %v1747
        %1801 = vmatpush.bf16.msra.mxu0 %v1746
        %1802 = vmatmul.bf16.gmra.mxu0 %v1414
        %v1803 = vpop.f32.mrf.mxu0
        %v1804 = vadd.f32 0.0, %v1803
        %v1805 = vpop.f32.mrf.mxu0
        %v1806 = vadd.f32 0.0, %v1805
        %1807 = vmatmul.bf16.gmra.mxu0 %v1415
        %v1808 = vpop.f32.mrf.mxu0
        %v1809 = vadd.f32 0.0, %v1808
        %v1810 = vpop.f32.mrf.mxu0
        %v1811 = vadd.f32 0.0, %v1810
        %1812 = vmatmul.bf16.gmra.mxu0 %v1416
        %v1813 = vpop.f32.mrf.mxu0
        %v1814 = vadd.f32 0.0, %v1813
        %v1815 = vpop.f32.mrf.mxu0
        %v1816 = vadd.f32 0.0, %v1815
        %1817 = vmatmul.bf16.gmra.mxu0 %v1417
        %v1818 = vpop.f32.mrf.mxu0
        %v1819 = vadd.f32 0.0, %v1818
        %v1820 = vpop.f32.mrf.mxu0
        %v1821 = vadd.f32 0.0, %v1820
        %1822 = vmatmul.bf16.gmra.mxu0 %v1418
        %v1823 = vpop.f32.mrf.mxu0
        %v1824 = vadd.f32 0.0, %v1823
        %v1825 = vpop.f32.mrf.mxu0
        %v1826 = vadd.f32 0.0, %v1825
        %1827 = vmatmul.bf16.gmra.mxu0 %v1419
        %v1828 = vpop.f32.mrf.mxu0
        %v1829 = vadd.f32 0.0, %v1828
        %v1830 = vpop.f32.mrf.mxu0
        %v1831 = vadd.f32 0.0, %v1830
        %1832 = vmatmul.bf16.gmra.mxu0 %v1420
        %v1833 = vpop.f32.mrf.mxu0
        %v1834 = vadd.f32 0.0, %v1833
        %v1835 = vpop.f32.mrf.mxu0
        %v1836 = vadd.f32 0.0, %v1835
        %1837 = vmatmul.bf16.gmra.mxu0 %v1421
        %v1838 = vpop.f32.mrf.mxu0
        %v1839 = vadd.f32 0.0, %v1838
        %v1840 = vpop.f32.mrf.mxu0
        %v1841 = vadd.f32 0.0, %v1840
        %1842 = vdwg.mxu0
        %1843 = vmatpush.bf16.msra.mxu0 %v1761
        %1844 = vmatpush.bf16.msra.mxu0 %v1760
        %1845 = vmatpush.bf16.msra.mxu0 %v1759
        %1846 = vmatpush.bf16.msra.mxu0 %v1758
        %1847 = vmatpush.bf16.msra.mxu0 %v1757
        %1848 = vmatpush.bf16.msra.mxu0 %v1756
        %1849 = vmatpush.bf16.msra.mxu0 %v1755
        %1850 = vmatpush.bf16.msra.mxu0 %v1754
        %1851 = vmatmul.bf16.gmra.mxu0 %v1474
        %v1852 = vpop.f32.mrf.mxu0
        %v1853 = vadd.f32 %v1804, %v1852
        %v1854 = vpop.f32.mrf.mxu0
        %v1855 = vadd.f32 %v1806, %v1854
        %1856 = vmatmul.bf16.gmra.mxu0 %v1475
        %v1857 = vpop.f32.mrf.mxu0
        %v1858 = vadd.f32 %v1809, %v1857
        %v1859 = vpop.f32.mrf.mxu0
        %v1860 = vadd.f32 %v1811, %v1859
        %1861 = vmatmul.bf16.gmra.mxu0 %v1476
        %v1862 = vpop.f32.mrf.mxu0
        %v1863 = vadd.f32 %v1814, %v1862
        %v1864 = vpop.f32.mrf.mxu0
        %v1865 = vadd.f32 %v1816, %v1864
        %1866 = vmatmul.bf16.gmra.mxu0 %v1477
        %v1867 = vpop.f32.mrf.mxu0
        %v1868 = vadd.f32 %v1819, %v1867
        %v1869 = vpop.f32.mrf.mxu0
        %v1870 = vadd.f32 %v1821, %v1869
        %1871 = vmatmul.bf16.gmra.mxu0 %v1478
        %v1872 = vpop.f32.mrf.mxu0
        %v1873 = vadd.f32 %v1824, %v1872
        %v1874 = vpop.f32.mrf.mxu0
        %v1875 = vadd.f32 %v1826, %v1874
        %1876 = vmatmul.bf16.gmra.mxu0 %v1479
        %v1877 = vpop.f32.mrf.mxu0
        %v1878 = vadd.f32 %v1829, %v1877
        %v1879 = vpop.f32.mrf.mxu0
        %v1880 = vadd.f32 %v1831, %v1879
        %1881 = vmatmul.bf16.gmra.mxu0 %v1480
        %v1882 = vpop.f32.mrf.mxu0
        %v1883 = vadd.f32 %v1834, %v1882
        %v1884 = vpop.f32.mrf.mxu0
        %v1885 = vadd.f32 %v1836, %v1884
        %1886 = vmatmul.bf16.gmra.mxu0 %v1481
        %v1887 = vpop.f32.mrf.mxu0
        %v1888 = vadd.f32 %v1839, %v1887
        %v1889 = vpop.f32.mrf.mxu0
        %v1890 = vadd.f32 %v1841, %v1889
        %1891 = vdwg.mxu0
        %1892 = vmatpush.bf16.msra.mxu0 %v1769
        %1893 = vmatpush.bf16.msra.mxu0 %v1768
        %1894 = vmatpush.bf16.msra.mxu0 %v1767
        %1895 = vmatpush.bf16.msra.mxu0 %v1766
        %1896 = vmatpush.bf16.msra.mxu0 %v1765
        %1897 = vmatpush.bf16.msra.mxu0 %v1764
        %1898 = vmatpush.bf16.msra.mxu0 %v1763
        %1899 = vmatpush.bf16.msra.mxu0 %v1762
        %1900 = vmatmul.bf16.gmra.mxu0 %v1534
        %v1901 = vpop.f32.mrf.mxu0
        %v1902 = vadd.f32 %v1853, %v1901
        %v1903 = vpop.f32.mrf.mxu0
        %v1904 = vadd.f32 %v1855, %v1903
        %1905 = vmatmul.bf16.gmra.mxu0 %v1535
        %v1906 = vpop.f32.mrf.mxu0
        %v1907 = vadd.f32 %v1858, %v1906
        %v1908 = vpop.f32.mrf.mxu0
        %v1909 = vadd.f32 %v1860, %v1908
        %1910 = vmatmul.bf16.gmra.mxu0 %v1536
        %v1911 = vpop.f32.mrf.mxu0
        %v1912 = vadd.f32 %v1863, %v1911
        %v1913 = vpop.f32.mrf.mxu0
        %v1914 = vadd.f32 %v1865, %v1913
        %1915 = vmatmul.bf16.gmra.mxu0 %v1537
        %v1916 = vpop.f32.mrf.mxu0
        %v1917 = vadd.f32 %v1868, %v1916
        %v1918 = vpop.f32.mrf.mxu0
        %v1919 = vadd.f32 %v1870, %v1918
        %1920 = vmatmul.bf16.gmra.mxu0 %v1538
        %v1921 = vpop.f32.mrf.mxu0
        %v1922 = vadd.f32 %v1873, %v1921
        %v1923 = vpop.f32.mrf.mxu0
        %v1924 = vadd.f32 %v1875, %v1923
        %1925 = vmatmul.bf16.gmra.mxu0 %v1539
        %v1926 = vpop.f32.mrf.mxu0
        %v1927 = vadd.f32 %v1878, %v1926
        %v1928 = vpop.f32.mrf.mxu0
        %v1929 = vadd.f32 %v1880, %v1928
        %1930 = vmatmul.bf16.gmra.mxu0 %v1540
        %v1931 = vpop.f32.mrf.mxu0
        %v1932 = vadd.f32 %v1883, %v1931
        %v1933 = vpop.f32.mrf.mxu0
        %v1934 = vadd.f32 %v1885, %v1933
        %1935 = vmatmul.bf16.gmra.mxu0 %v1541
        %v1936 = vpop.f32.mrf.mxu0
        %v1937 = vadd.f32 %v1888, %v1936
        %v1938 = vpop.f32.mrf.mxu0
        %v1939 = vadd.f32 %v1890, %v1938
        %1940 = vdwg.mxu0
        %v1989 = vunpack.c.l.b16 %v1553
        %v1990 = vunpack.c.l.b16 %v1554
        %v1991 = vunpack.c.l.b16 %v1555
        %v1992 = vunpack.c.l.b16 %v1556
        %v1993 = vunpack.c.l.b16 %v1557
        %v1994 = vunpack.c.l.b16 %v1558
        %v1995 = vunpack.c.l.b16 %v1559
        %v1996 = vunpack.c.l.b16 %v1560
        %v1997 = vunpack.c.l.b16 %v1561
        %v1998 = vunpack.c.l.b16 %v1562
        %v1999 = vunpack.c.l.b16 %v1563
        %v2000 = vunpack.c.l.b16 %v1564
        %v2001 = vunpack.c.l.b16 %v1565
        %v2002 = vunpack.c.l.b16 %v1566
        %v2003 = vunpack.c.l.b16 %v1567
        %v2004 = vunpack.c.l.b16 %v1568
        %v2005 = vunpack.c.l.b16 %v1569
        %v2006 = vunpack.c.l.b16 %v1570
        %v2007 = vunpack.c.l.b16 %v1571
        %v2008 = vunpack.c.l.b16 %v1572
        %v2009 = vunpack.c.l.b16 %v1573
        %v2010 = vunpack.c.l.b16 %v1574
        %v2011 = vunpack.c.l.b16 %v1575
        %v2012 = vunpack.c.l.b16 %v1576
        %v2013 = vunpack.c.l.b16 %v1577
        %v2014 = vunpack.c.l.b16 %v1578
        %v2015 = vunpack.c.l.b16 %v1579
        %v2016 = vunpack.c.l.b16 %v1580
        %v2017 = vunpack.c.l.b16 %v1581
        %v2018 = vunpack.c.l.b16 %v1582
        %v2019 = vunpack.c.l.b16 %v1583
        %v2020 = vunpack.c.l.b16 %v1584
        %v2021 = vunpack.c.l.b16 %v1585
        %v2022 = vunpack.c.l.b16 %v1586
        %v2023 = vunpack.c.l.b16 %v1587
        %v2024 = vunpack.c.l.b16 %v1588
        %v2025 = vunpack.c.l.b16 %v1589
        %v2026 = vunpack.c.l.b16 %v1590
        %v2027 = vunpack.c.l.b16 %v1591
        %v2028 = vunpack.c.l.b16 %v1592
        %v2029 = vunpack.c.l.b16 %v1593
        %v2030 = vunpack.c.l.b16 %v1594
        %v2031 = vunpack.c.l.b16 %v1595
        %v2032 = vunpack.c.l.b16 %v1596
        %v2033 = vunpack.c.l.b16 %v1597
        %v2034 = vunpack.c.l.b16 %v1598
        %v2035 = vunpack.c.l.b16 %v1599
        %v2036 = vunpack.c.l.b16 %v1600
        %v2037 = vpack.c.b16 %v1990, %v1989
        %v2038 = vpack.c.b16 %v1992, %v1991
        %v2039 = vpack.c.b16 %v1994, %v1993
        %v2040 = vpack.c.b16 %v1996, %v1995
        %v2041 = vpack.c.b16 %v1998, %v1997
        %v2042 = vpack.c.b16 %v2000, %v1999
        %v2043 = vpack.c.b16 %v2002, %v2001
        %v2044 = vpack.c.b16 %v2004, %v2003
        %v2045 = vpack.c.b16 %v2006, %v2005
        %v2046 = vpack.c.b16 %v2008, %v2007
        %v2047 = vpack.c.b16 %v2010, %v2009
        %v2048 = vpack.c.b16 %v2012, %v2011
        %v2049 = vpack.c.b16 %v2014, %v2013
        %v2050 = vpack.c.b16 %v2016, %v2015
        %v2051 = vpack.c.b16 %v2018, %v2017
        %v2052 = vpack.c.b16 %v2020, %v2019
        %v2053 = vpack.c.b16 %v2022, %v2021
        %v2054 = vpack.c.b16 %v2024, %v2023
        %v2055 = vpack.c.b16 %v2026, %v2025
        %v2056 = vpack.c.b16 %v2028, %v2027
        %v2057 = vpack.c.b16 %v2030, %v2029
        %v2058 = vpack.c.b16 %v2032, %v2031
        %v2059 = vpack.c.b16 %v2034, %v2033
        %v2060 = vpack.c.b16 %v2036, %v2035
        %2085 = vmatpush.bf16.msra.mxu0 %v2044
        %2086 = vmatpush.bf16.msra.mxu0 %v2043
        %2087 = vmatpush.bf16.msra.mxu0 %v2042
        %2088 = vmatpush.bf16.msra.mxu0 %v2041
        %2089 = vmatpush.bf16.msra.mxu0 %v2040
        %2090 = vmatpush.bf16.msra.mxu0 %v2039
        %2091 = vmatpush.bf16.msra.mxu0 %v2038
        %2092 = vmatpush.bf16.msra.mxu0 %v2037
        %2093 = vmatmul.bf16.gmra.mxu0 %v1413
        %v2094 = vpop.f32.mrf.mxu0
        %v2095 = vadd.f32 %v1902, %v2094
        %v2096 = vpop.f32.mrf.mxu0
        %v2097 = vadd.f32 %v1904, %v2096
        %2098 = vmatmul.bf16.gmra.mxu0 %v1414
        %v2099 = vpop.f32.mrf.mxu0
        %v2100 = vadd.f32 %v1907, %v2099
        %v2101 = vpop.f32.mrf.mxu0
        %v2102 = vadd.f32 %v1909, %v2101
        %2103 = vmatmul.bf16.gmra.mxu0 %v1415
        %v2104 = vpop.f32.mrf.mxu0
        %v2105 = vadd.f32 %v1912, %v2104
        %v2106 = vpop.f32.mrf.mxu0
        %v2107 = vadd.f32 %v1914, %v2106
        %2108 = vmatmul.bf16.gmra.mxu0 %v1416
        %v2109 = vpop.f32.mrf.mxu0
        %v2110 = vadd.f32 %v1917, %v2109
        %v2111 = vpop.f32.mrf.mxu0
        %v2112 = vadd.f32 %v1919, %v2111
        %2113 = vmatmul.bf16.gmra.mxu0 %v1417
        %v2114 = vpop.f32.mrf.mxu0
        %v2115 = vadd.f32 %v1922, %v2114
        %v2116 = vpop.f32.mrf.mxu0
        %v2117 = vadd.f32 %v1924, %v2116
        %2118 = vmatmul.bf16.gmra.mxu0 %v1418
        %v2119 = vpop.f32.mrf.mxu0
        %v2120 = vadd.f32 %v1927, %v2119
        %v2121 = vpop.f32.mrf.mxu0
        %v2122 = vadd.f32 %v1929, %v2121
        %2123 = vmatmul.bf16.gmra.mxu0 %v1419
        %v2124 = vpop.f32.mrf.mxu0
        %v2125 = vadd.f32 %v1932, %v2124
        %v2126 = vpop.f32.mrf.mxu0
        %v2127 = vadd.f32 %v1934, %v2126
        %2128 = vmatmul.bf16.gmra.mxu0 %v1420
        %v2129 = vpop.f32.mrf.mxu0
        %v2130 = vadd.f32 %v1937, %v2129
        %v2131 = vpop.f32.mrf.mxu0
        %v2132 = vadd.f32 %v1939, %v2131
        %2133 = vdwg.mxu0
        %2134 = vmatpush.bf16.msra.mxu0 %v2052
        %2135 = vmatpush.bf16.msra.mxu0 %v2051
        %2136 = vmatpush.bf16.msra.mxu0 %v2050
        %2137 = vmatpush.bf16.msra.mxu0 %v2049
        %2138 = vmatpush.bf16.msra.mxu0 %v2048
        %2139 = vmatpush.bf16.msra.mxu0 %v2047
        %2140 = vmatpush.bf16.msra.mxu0 %v2046
        %2141 = vmatpush.bf16.msra.mxu0 %v2045
        %2142 = vmatmul.bf16.gmra.mxu0 %v1473
        %v2143 = vpop.f32.mrf.mxu0
        %v2144 = vadd.f32 %v2095, %v2143
        %v2145 = vpop.f32.mrf.mxu0
        %v2146 = vadd.f32 %v2097, %v2145
        %2147 = vmatmul.bf16.gmra.mxu0 %v1474
        %v2148 = vpop.f32.mrf.mxu0
        %v2149 = vadd.f32 %v2100, %v2148
        %v2150 = vpop.f32.mrf.mxu0
        %v2151 = vadd.f32 %v2102, %v2150
        %2152 = vmatmul.bf16.gmra.mxu0 %v1475
        %v2153 = vpop.f32.mrf.mxu0
        %v2154 = vadd.f32 %v2105, %v2153
        %v2155 = vpop.f32.mrf.mxu0
        %v2156 = vadd.f32 %v2107, %v2155
        %2157 = vmatmul.bf16.gmra.mxu0 %v1476
        %v2158 = vpop.f32.mrf.mxu0
        %v2159 = vadd.f32 %v2110, %v2158
        %v2160 = vpop.f32.mrf.mxu0
        %v2161 = vadd.f32 %v2112, %v2160
        %2162 = vmatmul.bf16.gmra.mxu0 %v1477
        %v2163 = vpop.f32.mrf.mxu0
        %v2164 = vadd.f32 %v2115, %v2163
        %v2165 = vpop.f32.mrf.mxu0
        %v2166 = vadd.f32 %v2117, %v2165
        %2167 = vmatmul.bf16.gmra.mxu0 %v1478
        %v2168 = vpop.f32.mrf.mxu0
        %v2169 = vadd.f32 %v2120, %v2168
        %v2170 = vpop.f32.mrf.mxu0
        %v2171 = vadd.f32 %v2122, %v2170
        %2172 = vmatmul.bf16.gmra.mxu0 %v1479
        %v2173 = vpop.f32.mrf.mxu0
        %v2174 = vadd.f32 %v2125, %v2173
        %v2175 = vpop.f32.mrf.mxu0
        %v2176 = vadd.f32 %v2127, %v2175
        %2177 = vmatmul.bf16.gmra.mxu0 %v1480
        %v2178 = vpop.f32.mrf.mxu0
        %v2179 = vadd.f32 %v2130, %v2178
        %v2180 = vpop.f32.mrf.mxu0
        %v2181 = vadd.f32 %v2132, %v2180
        %2182 = vdwg.mxu0
        %2183 = vmatpush.bf16.msra.mxu0 %v2060
        %2184 = vmatpush.bf16.msra.mxu0 %v2059
        %2185 = vmatpush.bf16.msra.mxu0 %v2058
        %2186 = vmatpush.bf16.msra.mxu0 %v2057
        %2187 = vmatpush.bf16.msra.mxu0 %v2056
        %2188 = vmatpush.bf16.msra.mxu0 %v2055
        %2189 = vmatpush.bf16.msra.mxu0 %v2054
        %2190 = vmatpush.bf16.msra.mxu0 %v2053
        %2191 = vmatmul.bf16.gmra.mxu0 %v1533
        %v2192 = vpop.f32.mrf.mxu0
        %v2193 = vadd.f32 %v2144, %v2192
        %v2194 = vpop.f32.mrf.mxu0
        %v2195 = vadd.f32 %v2146, %v2194
        %2196 = vmatmul.bf16.gmra.mxu0 %v1534
        %v2197 = vpop.f32.mrf.mxu0
        %v2198 = vadd.f32 %v2149, %v2197
        %v2199 = vpop.f32.mrf.mxu0
        %v2200 = vadd.f32 %v2151, %v2199
        %2201 = vmatmul.bf16.gmra.mxu0 %v1535
        %v2202 = vpop.f32.mrf.mxu0
        %v2203 = vadd.f32 %v2154, %v2202
        %v2204 = vpop.f32.mrf.mxu0
        %v2205 = vadd.f32 %v2156, %v2204
        %2206 = vmatmul.bf16.gmra.mxu0 %v1536
        %v2207 = vpop.f32.mrf.mxu0
        %v2208 = vadd.f32 %v2159, %v2207
        %v2209 = vpop.f32.mrf.mxu0
        %v2210 = vadd.f32 %v2161, %v2209
        %2211 = vmatmul.bf16.gmra.mxu0 %v1537
        %v2212 = vpop.f32.mrf.mxu0
        %v2213 = vadd.f32 %v2164, %v2212
        %v2214 = vpop.f32.mrf.mxu0
        %v2215 = vadd.f32 %v2166, %v2214
        %2216 = vmatmul.bf16.gmra.mxu0 %v1538
        %v2217 = vpop.f32.mrf.mxu0
        %v2218 = vadd.f32 %v2169, %v2217
        %v2219 = vpop.f32.mrf.mxu0
        %v2220 = vadd.f32 %v2171, %v2219
        %2221 = vmatmul.bf16.gmra.mxu0 %v1539
        %v2222 = vpop.f32.mrf.mxu0
        %v2223 = vadd.f32 %v2174, %v2222
        %v2224 = vpop.f32.mrf.mxu0
        %v2225 = vadd.f32 %v2176, %v2224
        %2226 = vmatmul.bf16.gmra.mxu0 %v1540
        %v2227 = vpop.f32.mrf.mxu0
        %v2228 = vadd.f32 %v2179, %v2227
        %v2229 = vpop.f32.mrf.mxu0
        %v2230 = vadd.f32 %v2181, %v2229
        %2231 = vdwg.mxu0
        %s2232 = scalar_lea.vmem [#allocation2], 384
        %v2233 = vld [vmem:[%s2232] sm:$0xf]
        %v2234 = vld [vmem:[%s2232 + $0x4] sm:$0xf]
        %v2235 = vld [vmem:[%s2232 + $0x8] sm:$0xf]
        %v2236 = vld [vmem:[%s2232 + $0xc] sm:$0xf]
        %v2237 = vld [vmem:[%s2232 + $0x10] sm:$0xf]
        %v2238 = vld [vmem:[%s2232 + $0x14] sm:$0xf]
        %v2239 = vld [vmem:[%s2232 + $0x18] sm:$0xf]
        %v2240 = vld [vmem:[%s2232 + $0x1c] sm:$0xf]
        %v2241 = vld [vmem:[%s2232 + $0x20] sm:$0xf]
        %v2242 = vld [vmem:[%s2232 + $0x24] sm:$0xf]
        %v2243 = vld [vmem:[%s2232 + $0x28] sm:$0xf]
        %v2244 = vld [vmem:[%s2232 + $0x2c] sm:$0xf]
        %v2245 = vld [vmem:[%s2232 + $0x30] sm:$0xf]
        %v2246 = vld [vmem:[%s2232 + $0x34] sm:$0xf]
        %v2247 = vld [vmem:[%s2232 + $0x38] sm:$0xf]
        %v2248 = vld [vmem:[%s2232 + $0x3c] sm:$0xf]
        %v2249 = vld [vmem:[%s2232 + $0x40] sm:$0xf]
        %v2250 = vld [vmem:[%s2232 + $0x44] sm:$0xf]
        %v2251 = vld [vmem:[%s2232 + $0x48] sm:$0xf]
        %v2252 = vld [vmem:[%s2232 + $0x4c] sm:$0xf]
        %v2253 = vld [vmem:[%s2232 + $0x50] sm:$0xf]
        %v2254 = vld [vmem:[%s2232 + $0x54] sm:$0xf]
        %v2255 = vld [vmem:[%s2232 + $0x58] sm:$0xf]
        %v2256 = vld [vmem:[%s2232 + $0x5c] sm:$0xf]
        %v2257 = vld [vmem:[%s2232 + $0x60] sm:$0xf]
        %v2258 = vld [vmem:[%s2232 + $0x64] sm:$0xf]
        %v2259 = vld [vmem:[%s2232 + $0x68] sm:$0xf]
        %v2260 = vld [vmem:[%s2232 + $0x6c] sm:$0xf]
        %v2261 = vld [vmem:[%s2232 + $0x70] sm:$0xf]
        %v2262 = vld [vmem:[%s2232 + $0x74] sm:$0xf]
        %v2263 = vld [vmem:[%s2232 + $0x78] sm:$0xf]
        %v2264 = vld [vmem:[%s2232 + $0x7c] sm:$0xf]
        %v2265 = vld [vmem:[%s2232 + $0x80] sm:$0xf]
        %v2266 = vld [vmem:[%s2232 + $0x84] sm:$0xf]
        %v2267 = vld [vmem:[%s2232 + $0x88] sm:$0xf]
        %v2268 = vld [vmem:[%s2232 + $0x8c] sm:$0xf]
        %v2269 = vld [vmem:[%s2232 + $0x90] sm:$0xf]
        %v2270 = vld [vmem:[%s2232 + $0x94] sm:$0xf]
        %v2271 = vld [vmem:[%s2232 + $0x98] sm:$0xf]
        %v2272 = vld [vmem:[%s2232 + $0x9c] sm:$0xf]
        %v2273 = vld [vmem:[%s2232 + $0xa0] sm:$0xf]
        %v2274 = vld [vmem:[%s2232 + $0xa4] sm:$0xf]
        %v2275 = vld [vmem:[%s2232 + $0xa8] sm:$0xf]
        %v2276 = vld [vmem:[%s2232 + $0xac] sm:$0xf]
        %v2277 = vld [vmem:[%s2232 + $0xb0] sm:$0xf]
        %v2278 = vld [vmem:[%s2232 + $0xb4] sm:$0xf]
        %v2279 = vld [vmem:[%s2232 + $0xb8] sm:$0xf]
        %v2280 = vld [vmem:[%s2232 + $0xbc] sm:$0xf]
        %v2329 = vunpack.c.l.b16 %v2233
        %v2330 = vunpack.c.l.b16 %v2234
        %v2331 = vunpack.c.l.b16 %v2235
        %v2332 = vunpack.c.l.b16 %v2236
        %v2333 = vunpack.c.l.b16 %v2237
        %v2334 = vunpack.c.l.b16 %v2238
        %v2335 = vunpack.c.l.b16 %v2239
        %v2336 = vunpack.c.l.b16 %v2240
        %v2337 = vunpack.c.l.b16 %v2241
        %v2338 = vunpack.c.l.b16 %v2242
        %v2339 = vunpack.c.l.b16 %v2243
        %v2340 = vunpack.c.l.b16 %v2244
        %v2341 = vunpack.c.l.b16 %v2245
        %v2342 = vunpack.c.l.b16 %v2246
        %v2343 = vunpack.c.l.b16 %v2247
        %v2344 = vunpack.c.l.b16 %v2248
        %v2345 = vunpack.c.l.b16 %v2249
        %v2346 = vunpack.c.l.b16 %v2250
        %v2347 = vunpack.c.l.b16 %v2251
        %v2348 = vunpack.c.l.b16 %v2252
        %v2349 = vunpack.c.l.b16 %v2253
        %v2350 = vunpack.c.l.b16 %v2254
        %v2351 = vunpack.c.l.b16 %v2255
        %v2352 = vunpack.c.l.b16 %v2256
        %v2353 = vunpack.c.l.b16 %v2257
        %v2354 = vunpack.c.l.b16 %v2258
        %v2355 = vunpack.c.l.b16 %v2259
        %v2356 = vunpack.c.l.b16 %v2260
        %v2357 = vunpack.c.l.b16 %v2261
        %v2358 = vunpack.c.l.b16 %v2262
        %v2359 = vunpack.c.l.b16 %v2263
        %v2360 = vunpack.c.l.b16 %v2264
        %v2361 = vunpack.c.l.b16 %v2265
        %v2362 = vunpack.c.l.b16 %v2266
        %v2363 = vunpack.c.l.b16 %v2267
        %v2364 = vunpack.c.l.b16 %v2268
        %v2365 = vunpack.c.l.b16 %v2269
        %v2366 = vunpack.c.l.b16 %v2270
        %v2367 = vunpack.c.l.b16 %v2271
        %v2368 = vunpack.c.l.b16 %v2272
        %v2369 = vunpack.c.l.b16 %v2273
        %v2370 = vunpack.c.l.b16 %v2274
        %v2371 = vunpack.c.l.b16 %v2275
        %v2372 = vunpack.c.l.b16 %v2276
        %v2373 = vunpack.c.l.b16 %v2277
        %v2374 = vunpack.c.l.b16 %v2278
        %v2375 = vunpack.c.l.b16 %v2279
        %v2376 = vunpack.c.l.b16 %v2280
        %v2377 = vpack.c.b16 %v2330, %v2329
        %v2378 = vpack.c.b16 %v2332, %v2331
        %v2379 = vpack.c.b16 %v2334, %v2333
        %v2380 = vpack.c.b16 %v2336, %v2335
        %v2381 = vpack.c.b16 %v2338, %v2337
        %v2382 = vpack.c.b16 %v2340, %v2339
        %v2383 = vpack.c.b16 %v2342, %v2341
        %v2384 = vpack.c.b16 %v2344, %v2343
        %v2385 = vpack.c.b16 %v2346, %v2345
        %v2386 = vpack.c.b16 %v2348, %v2347
        %v2387 = vpack.c.b16 %v2350, %v2349
        %v2388 = vpack.c.b16 %v2352, %v2351
        %v2389 = vpack.c.b16 %v2354, %v2353
        %v2390 = vpack.c.b16 %v2356, %v2355
        %v2391 = vpack.c.b16 %v2358, %v2357
        %v2392 = vpack.c.b16 %v2360, %v2359
        %v2393 = vpack.c.b16 %v2362, %v2361
        %v2394 = vpack.c.b16 %v2364, %v2363
        %v2395 = vpack.c.b16 %v2366, %v2365
        %v2396 = vpack.c.b16 %v2368, %v2367
        %v2397 = vpack.c.b16 %v2370, %v2369
        %v2398 = vpack.c.b16 %v2372, %v2371
        %v2399 = vpack.c.b16 %v2374, %v2373
        %v2400 = vpack.c.b16 %v2376, %v2375
        %2425 = vmatpush.bf16.msra.mxu0 %v2384
        %2426 = vmatpush.bf16.msra.mxu0 %v2383
        %2427 = vmatpush.bf16.msra.mxu0 %v2382
        %2428 = vmatpush.bf16.msra.mxu0 %v2381
        %2429 = vmatpush.bf16.msra.mxu0 %v2380
        %2430 = vmatpush.bf16.msra.mxu0 %v2379
        %2431 = vmatpush.bf16.msra.mxu0 %v2378
        %2432 = vmatpush.bf16.msra.mxu0 %v2377
        %2433 = vmatmul.bf16.gmra.mxu0 %v1415
        %v2434 = vpop.f32.mrf.mxu0
        %v2435 = vadd.f32 0.0, %v2434
        %v2436 = vpop.f32.mrf.mxu0
        %v2437 = vadd.f32 0.0, %v2436
        %2438 = vmatmul.bf16.gmra.mxu0 %v1416
        %v2439 = vpop.f32.mrf.mxu0
        %v2440 = vadd.f32 0.0, %v2439
        %v2441 = vpop.f32.mrf.mxu0
        %v2442 = vadd.f32 0.0, %v2441
        %2443 = vmatmul.bf16.gmra.mxu0 %v1417
        %v2444 = vpop.f32.mrf.mxu0
        %v2445 = vadd.f32 0.0, %v2444
        %v2446 = vpop.f32.mrf.mxu0
        %v2447 = vadd.f32 0.0, %v2446
        %2448 = vmatmul.bf16.gmra.mxu0 %v1418
        %v2449 = vpop.f32.mrf.mxu0
        %v2450 = vadd.f32 0.0, %v2449
        %v2451 = vpop.f32.mrf.mxu0
        %v2452 = vadd.f32 0.0, %v2451
        %2453 = vmatmul.bf16.gmra.mxu0 %v1419
        %v2454 = vpop.f32.mrf.mxu0
        %v2455 = vadd.f32 0.0, %v2454
        %v2456 = vpop.f32.mrf.mxu0
        %v2457 = vadd.f32 0.0, %v2456
        %2458 = vmatmul.bf16.gmra.mxu0 %v1420
        %v2459 = vpop.f32.mrf.mxu0
        %v2460 = vadd.f32 0.0, %v2459
        %v2461 = vpop.f32.mrf.mxu0
        %v2462 = vadd.f32 0.0, %v2461
        %2463 = vmatmul.bf16.gmra.mxu0 %v1421
        %v2464 = vpop.f32.mrf.mxu0
        %v2465 = vadd.f32 0.0, %v2464
        %v2466 = vpop.f32.mrf.mxu0
        %v2467 = vadd.f32 0.0, %v2466
        %2468 = vmatmul.bf16.gmra.mxu0 %v1422
        %v2469 = vpop.f32.mrf.mxu0
        %v2470 = vadd.f32 0.0, %v2469
        %v2471 = vpop.f32.mrf.mxu0
        %v2472 = vadd.f32 0.0, %v2471
        %2473 = vdwg.mxu0
        %2474 = vmatpush.bf16.msra.mxu0 %v2392
        %2475 = vmatpush.bf16.msra.mxu0 %v2391
        %2476 = vmatpush.bf16.msra.mxu0 %v2390
        %2477 = vmatpush.bf16.msra.mxu0 %v2389
        %2478 = vmatpush.bf16.msra.mxu0 %v2388
        %2479 = vmatpush.bf16.msra.mxu0 %v2387
        %2480 = vmatpush.bf16.msra.mxu0 %v2386
        %2481 = vmatpush.bf16.msra.mxu0 %v2385
        %2482 = vmatmul.bf16.gmra.mxu0 %v1475
        %v2483 = vpop.f32.mrf.mxu0
        %v2484 = vadd.f32 %v2435, %v2483
        %v2485 = vpop.f32.mrf.mxu0
        %v2486 = vadd.f32 %v2437, %v2485
        %2487 = vmatmul.bf16.gmra.mxu0 %v1476
        %v2488 = vpop.f32.mrf.mxu0
        %v2489 = vadd.f32 %v2440, %v2488
        %v2490 = vpop.f32.mrf.mxu0
        %v2491 = vadd.f32 %v2442, %v2490
        %2492 = vmatmul.bf16.gmra.mxu0 %v1477
        %v2493 = vpop.f32.mrf.mxu0
        %v2494 = vadd.f32 %v2445, %v2493
        %v2495 = vpop.f32.mrf.mxu0
        %v2496 = vadd.f32 %v2447, %v2495
        %2497 = vmatmul.bf16.gmra.mxu0 %v1478
        %v2498 = vpop.f32.mrf.mxu0
        %v2499 = vadd.f32 %v2450, %v2498
        %v2500 = vpop.f32.mrf.mxu0
        %v2501 = vadd.f32 %v2452, %v2500
        %2502 = vmatmul.bf16.gmra.mxu0 %v1479
        %v2503 = vpop.f32.mrf.mxu0
        %v2504 = vadd.f32 %v2455, %v2503
        %v2505 = vpop.f32.mrf.mxu0
        %v2506 = vadd.f32 %v2457, %v2505
        %2507 = vmatmul.bf16.gmra.mxu0 %v1480
        %v2508 = vpop.f32.mrf.mxu0
        %v2509 = vadd.f32 %v2460, %v2508
        %v2510 = vpop.f32.mrf.mxu0
        %v2511 = vadd.f32 %v2462, %v2510
        %2512 = vmatmul.bf16.gmra.mxu0 %v1481
        %v2513 = vpop.f32.mrf.mxu0
        %v2514 = vadd.f32 %v2465, %v2513
        %v2515 = vpop.f32.mrf.mxu0
        %v2516 = vadd.f32 %v2467, %v2515
        %2517 = vmatmul.bf16.gmra.mxu0 %v1482
        %v2518 = vpop.f32.mrf.mxu0
        %v2519 = vadd.f32 %v2470, %v2518
        %v2520 = vpop.f32.mrf.mxu0
        %v2521 = vadd.f32 %v2472, %v2520
        %2522 = vdwg.mxu0
        %2523 = vmatpush.bf16.msra.mxu0 %v2400
        %2524 = vmatpush.bf16.msra.mxu0 %v2399
        %2525 = vmatpush.bf16.msra.mxu0 %v2398
        %2526 = vmatpush.bf16.msra.mxu0 %v2397
        %2527 = vmatpush.bf16.msra.mxu0 %v2396
        %2528 = vmatpush.bf16.msra.mxu0 %v2395
        %2529 = vmatpush.bf16.msra.mxu0 %v2394
        %2530 = vmatpush.bf16.msra.mxu0 %v2393
        %2531 = vmatmul.bf16.gmra.mxu0 %v1535
        %v2532 = vpop.f32.mrf.mxu0
        %v2533 = vadd.f32 %v2484, %v2532
        %v2534 = vpop.f32.mrf.mxu0
        %v2535 = vadd.f32 %v2486, %v2534
        %2536 = vmatmul.bf16.gmra.mxu0 %v1536
        %v2537 = vpop.f32.mrf.mxu0
        %v2538 = vadd.f32 %v2489, %v2537
        %v2539 = vpop.f32.mrf.mxu0
        %v2540 = vadd.f32 %v2491, %v2539
        %2541 = vmatmul.bf16.gmra.mxu0 %v1537
        %v2542 = vpop.f32.mrf.mxu0
        %v2543 = vadd.f32 %v2494, %v2542
        %v2544 = vpop.f32.mrf.mxu0
        %v2545 = vadd.f32 %v2496, %v2544
        %2546 = vmatmul.bf16.gmra.mxu0 %v1538
        %v2547 = vpop.f32.mrf.mxu0
        %v2548 = vadd.f32 %v2499, %v2547
        %v2549 = vpop.f32.mrf.mxu0
        %v2550 = vadd.f32 %v2501, %v2549
        %2551 = vmatmul.bf16.gmra.mxu0 %v1539
        %v2552 = vpop.f32.mrf.mxu0
        %v2553 = vadd.f32 %v2504, %v2552
        %v2554 = vpop.f32.mrf.mxu0
        %v2555 = vadd.f32 %v2506, %v2554
        %2556 = vmatmul.bf16.gmra.mxu0 %v1540
        %v2557 = vpop.f32.mrf.mxu0
        %v2558 = vadd.f32 %v2509, %v2557
        %v2559 = vpop.f32.mrf.mxu0
        %v2560 = vadd.f32 %v2511, %v2559
        %2561 = vmatmul.bf16.gmra.mxu0 %v1541
        %v2562 = vpop.f32.mrf.mxu0
        %v2563 = vadd.f32 %v2514, %v2562
        %v2564 = vpop.f32.mrf.mxu0
        %v2565 = vadd.f32 %v2516, %v2564
        %2566 = vmatmul.bf16.gmra.mxu0 %v1542
        %v2567 = vpop.f32.mrf.mxu0
        %v2568 = vadd.f32 %v2519, %v2567
        %v2569 = vpop.f32.mrf.mxu0
        %v2570 = vadd.f32 %v2521, %v2569
        %2571 = vdwg.mxu0
        %v2572 = vadd.f32 %v2193, %v2533
        %v2573 = vadd.f32 %v2195, %v2535
        %v2574 = vadd.f32 %v2198, %v2538
        %v2575 = vadd.f32 %v2200, %v2540
        %v2576 = vadd.f32 %v2203, %v2543
        %v2577 = vadd.f32 %v2205, %v2545
        %v2578 = vadd.f32 %v2208, %v2548
        %v2579 = vadd.f32 %v2210, %v2550
        %v2580 = vadd.f32 %v2213, %v2553
        %v2581 = vadd.f32 %v2215, %v2555
        %v2582 = vadd.f32 %v2218, %v2558
        %v2583 = vadd.f32 %v2220, %v2560
        %v2584 = vadd.f32 %v2223, %v2563
        %v2585 = vadd.f32 %v2225, %v2565
        %v2586 = vadd.f32 %v2228, %v2568
        %v2587 = vadd.f32 %v2230, %v2570
        %v2588 = vpack.c.bf16 %v2572, %v2572
        %v2589 = vpack.c.bf16 %v2573, %v2573
        %v2590 = vpack.c.bf16 %v2574, %v2574
        %v2591 = vpack.c.bf16 %v2575, %v2575
        %v2592 = vpack.c.bf16 %v2576, %v2576
        %v2593 = vpack.c.bf16 %v2577, %v2577
        %v2594 = vpack.c.bf16 %v2578, %v2578
        %v2595 = vpack.c.bf16 %v2579, %v2579
        %v2596 = vpack.c.bf16 %v2580, %v2580
        %v2597 = vpack.c.bf16 %v2581, %v2581
        %v2598 = vpack.c.bf16 %v2582, %v2582
        %v2599 = vpack.c.bf16 %v2583, %v2583
        %v2600 = vpack.c.bf16 %v2584, %v2584
        %v2601 = vpack.c.bf16 %v2585, %v2585
        %v2602 = vpack.c.bf16 %v2586, %v2586
        %v2603 = vpack.c.bf16 %v2587, %v2587
        %2604 = vst [vmem:[%s221] sm:$0xf] %v2588
        %2605 = vst [vmem:[%s221 + $0x4] sm:$0xf] %v2589
        %2606 = vst [vmem:[%s221 + $0x8] sm:$0xf] %v2590
        %2607 = vst [vmem:[%s221 + $0xc] sm:$0xf] %v2591
        %2608 = vst [vmem:[%s221 + $0x10] sm:$0xf] %v2592
        %2609 = vst [vmem:[%s221 + $0x14] sm:$0xf] %v2593
        %2610 = vst [vmem:[%s221 + $0x18] sm:$0xf] %v2594
        %2611 = vst [vmem:[%s221 + $0x1c] sm:$0xf] %v2595
        %2612 = vst [vmem:[%s221 + $0x20] sm:$0xf] %v2596
        %2613 = vst [vmem:[%s221 + $0x24] sm:$0xf] %v2597
        %2614 = vst [vmem:[%s221 + $0x28] sm:$0xf] %v2598
        %2615 = vst [vmem:[%s221 + $0x2c] sm:$0xf] %v2599
        %2616 = vst [vmem:[%s221 + $0x30] sm:$0xf] %v2600
        %2617 = vst [vmem:[%s221 + $0x34] sm:$0xf] %v2601
        %2618 = vst [vmem:[%s221 + $0x38] sm:$0xf] %v2602
        %2619 = vst [vmem:[%s221 + $0x3c] sm:$0xf] %v2603
        %s2620 = sand.u32 %s130, 1
        %s2621 = scalar_lea.sflag [#allocation4], %s2620
        %s2622 = sand.u32 %s130, 1
        %s2623 = smul.addr %s2622, 64
        %s2624 = scalar_lea.vmem [#allocation5], %s2623
        // Predicated region
        $region41: #{tpu_custom_call.1} parent=35 // pred_check
          %p2625 = pneg %p140
        $region42: #{tpu_custom_call.1} parent=35 // pred_check_branch
          %2627 = sbr.rel (%p2625) target = $region44
        $region43: #{tpu_custom_call.1} parent=35 // pred_region
          %s2628 = smul.u32 16, %s24
          %2630 = vsyncadd %s2621, 0
          %s2631 = smul.addr %s23, 32
          %s2632 = sadd.s32 %s2628, %s2631
          %s2633 = smul.addr %s2632, 4
          %s2634 = scalar_lea.hbm %s4, %s2633
          %s2635 = sshll.u32 %s2624, 4
          %s2636 = int_to_ptr.vmem [resolvable:$true] %s2635
          %s2637 = sshll.u32 %s2634, 4
          %s2638 = int_to_ptr.hbm [resolvable:$true] %s2637
          %2643 = dma.vmem_to_hbm [thread:$0]  %s2636, 1024, %s2638, %s2621, 64, 64, 4
        $region44: #{tpu_custom_call.1} parent=35 // pred_fallthru
          _
      $region36: #{tpu_custom_call.1} parent=5 // pred_fallthru
        _
      %p2644 = scmp.le.s32.totalorder 2, %s14
      // Predicated region
      $region45: #{tpu_custom_call.1} parent=5 // pred_check
        %p2645 = pneg %p2644
      $region46: #{tpu_custom_call.1} parent=5 // pred_check_branch
        %2647 = sbr.rel (%p2645) target = $region48
      $region47: #{tpu_custom_call.1} parent=5 // pred_region
        %s2648 = ssub.s32 %s14, 2
        // Predicated region
        $region49: #{tpu_custom_call.1} parent=47 // pred_check
          %p2649 = pneg %p146
        $region50: #{tpu_custom_call.1} parent=47 // pred_check_branch
          %2651 = sbr.rel (%p2649) target = $region52
        $region51: #{tpu_custom_call.1} parent=47 // pred_region
          %s2652 = sand.u32 %s131, 1
          %s2653 = scalar_lea.sflag [#allocation4], %s2652
          %s2654 = sand.u32 %s131, 1
          %s2655 = smul.addr %s2654, 64
          %s2656 = scalar_lea.vmem [#allocation5], %s2655
          %2658 = dma.done %s2653, 1024
        $region52: #{tpu_custom_call.1} parent=47 // pred_fallthru
          _
      $region48: #{tpu_custom_call.1} parent=5 // pred_fallthru
        _
    $region6: #{tpu_custom_call.1} parent=1 // loop_footer
      %s18 = sadd.s32 1, %s14
    $region7: #{tpu_custom_call.1} parent=1 // loop_footer_branch
      %13 = sbr.rel target = $region3
    $region8: #{tpu_custom_call.1} parent=1 // loop_exit
      _
    %2659 = vsyncpa [#allocation3], 1
    %s2660 = scalar_lea.sflag [#allocation3], 1
    %2661 = vsyncpa %s2660, 1
    %2662 = vsyncpa [#allocation4], 1
    %s2663 = scalar_lea.sflag [#allocation4], 1
    %2664 = vsyncpa %s2663, 1

</llo_original>
